<compile_context>
chip_gen: v6e
topology: v6e:2x2x1
jax: 0.10.0
libtpu: 0.0.40
codegen_flags: <defaults>
</compile_context>

<pallas_src>
import functools

import jax
import jax.numpy as jnp
from jax import lax
from jax.experimental import pallas as pl
from jax.experimental.pallas import tpu as pltpu

PAD = 128          # lane-dense width for the packed weight / bias tiles
HIDDEN = 64        # common-net hidden width == fused-branch hidden width
BATCH_TILE = 512   # batch tile (review: 512-1024 reaches ~85% of HBM roofline)


def _round_up(n, m):
    return ((n + m - 1) // m) * m


def duelnet_kernel(x_ref, w_ref, b_ref, q_ref):
    """Fused 3-layer dueling MLP. x is narrow (B, in_size); output is narrow
    (B, out). Weights live in a single VMEM-resident (3,128,128) slab."""
    in_size = x_ref.shape[1]
    out_size = q_ref.shape[1]
    prec = lax.Precision.HIGHEST

    # layer 0: common net  relu(x @ W1 + b1); weight sliced to the real fan-in
    # (static, sublane-aligned slice -> no masked loads).
    h = jnp.dot(x_ref[...], w_ref[0][:in_size, :],
                preferred_element_type=jnp.float32, precision=prec) + b_ref[0]
    h = jnp.maximum(h, 0.0)

    # layer 1: fused advantage/value hidden layer -> [a | v_hidden] (padded
    # lanes stay exactly 0 because the padded weight columns/biases are 0).
    z = jnp.dot(h, w_ref[1],
                preferred_element_type=jnp.float32, precision=prec) + b_ref[1]
    z = jnp.maximum(z, 0.0)

    # layer 2: fused head -> q directly (advantage centering + v-broadcast
    # folded into W/b on the host); store only the real action columns.
    head = jnp.dot(z, w_ref[2],
                   preferred_element_type=jnp.float32, precision=prec) + b_ref[2]
    q_ref[...] = head[:, :out_size]


def init_params(key, input_size, output_size):
    """Deterministic init mimicking torch.nn.Linear default (+/- 1/sqrt(fan_in)).
    Weights are stored as (in_features, out_features)."""
    def linear(key, fan_in, fan_out):
        kw, kb = jax.random.split(key)
        bound = 1.0 / jnp.sqrt(fan_in)
        w = jax.random.uniform(kw, (fan_in, fan_out), jnp.float32, -bound, bound)
        b = jax.random.uniform(kb, (1, fan_out), jnp.float32, -bound, bound)
        return w, b

    k1, k2, k3, k4, k5 = jax.random.split(key, 5)
    w1, b1 = linear(k1, input_size, 64)       # common_net
    wa1, ba1 = linear(k2, 64, 32)             # advantage_net layer 1
    wa2, ba2 = linear(k3, 32, output_size)    # advantage_net layer 2
    wv1, bv1 = linear(k4, 64, 32)             # v_net layer 1
    wv2, bv2 = linear(k5, 32, 1)              # v_net layer 2
    return (w1, b1, wa1, ba1, wa2, ba2, wv1, bv1, wv2, bv2)


def pack_params(params, input_size, output_size):
    """Fold branch fusion + advantage centering + v-broadcast into 3 padded
    weight/bias tiles. Called once per parameter set; reused across forwards."""
    (w1, b1, wa1, ba1, wa2, ba2, wv1, bv1, wv2, bv2) = params
    out = output_size

    # Fold `adv - adv.mean(1, keepdims=True)` into the advantage head:
    # adv @ (I - 11^T/out) == a @ (wa2 - rowmean(wa2)) + (ba2 - mean(ba2)).
    wa2c = wa2 - jnp.mean(wa2, axis=1, keepdims=True)
    ba2c = ba2 - jnp.mean(ba2, axis=1, keepdims=True)

    # Fuse branch hidden layers: z = relu(h @ [wa1 | wv1] + [ba1 | bv1]).
    w_branch = jnp.concatenate([wa1, wv1], axis=1)          # (64, 64)
    b_branch = jnp.concatenate([ba1, bv1], axis=1)          # (1, 64)

    # Fuse heads so q = z @ w_head + b_head directly:
    #   rows 0:32  -> centered advantage head
    #   rows 32:64 -> value head broadcast over all `out` columns (q = v + adv)
    w_head = jnp.concatenate(
        [wa2c, jnp.broadcast_to(wv2, (wv2.shape[0], out))], axis=0)   # (64, out)
    b_head = ba2c + bv2                                               # (1, out)

    w_slab = jnp.zeros((3, PAD, PAD), jnp.float32)
    w_slab = w_slab.at[0, :input_size, :HIDDEN].set(w1)
    w_slab = w_slab.at[1, :HIDDEN, :HIDDEN].set(w_branch)
    w_slab = w_slab.at[2, :HIDDEN, :out].set(w_head)

    b_slab = jnp.zeros((3, 1, PAD), jnp.float32)
    b_slab = b_slab.at[0, 0, :HIDDEN].set(b1[0])
    b_slab = b_slab.at[1, 0, :HIDDEN].set(b_branch[0])
    b_slab = b_slab.at[2, 0, :out].set(b_head[0])
    return w_slab, b_slab


@functools.partial(jax.jit, static_argnames=("output_size",))
def duelnet_forward(x, w_slab, b_slab, output_size):
    x = x.astype(jnp.float32)
    B, in_size = x.shape

    # Universal pl.cdiv batch grid: tile <= BATCH_TILE, rows padded to a
    # multiple of the tile. Any B > tile gives >= 2 grid steps, so
    # dimension_semantics=("parallel",) shards programs across TensorCores on
    # megacore chips (v7x). Small batches collapse to a single 8-aligned tile.
    tile = min(BATCH_TILE, max(8, _round_up(B, 8)))
    grid = pl.cdiv(B, tile)
    b_pad = grid * tile
    if b_pad != B:
        x = jnp.pad(x, ((0, b_pad - B), (0, 0)))

    q = pl.pallas_call(
        duelnet_kernel,
        out_shape=jax.ShapeDtypeStruct((b_pad, output_size), jnp.float32),
        grid=(grid,),
        in_specs=[
            # x stays narrow: block last dim == full array dim (legal), no pad.
            pl.BlockSpec((tile, in_size), lambda i: (i, 0)),
            # Weight/bias slabs: constant block index -> VMEM-resident.
            pl.BlockSpec((3, PAD, PAD), lambda i: (0, 0, 0)),
            pl.BlockSpec((3, 1, PAD), lambda i: (0, 0, 0)),
        ],
        # Narrow output: only the real action columns hit HBM.
        out_specs=pl.BlockSpec((tile, output_size), lambda i: (i, 0)),
        compiler_params=pltpu.CompilerParams(
            dimension_semantics=("parallel",)),
    )(x, w_slab, b_slab)

    return q[:B]


def duelnet_ref(x, params):
    """Plain-JAX reference matching the PyTorch forward exactly."""
    (w1, b1, wa1, ba1, wa2, ba2, wv1, bv1, wv2, bv2) = params
    h = jnp.maximum(x @ w1 + b1, 0.0)
    adv = jnp.maximum(h @ wa1 + ba1, 0.0) @ wa2 + ba2
    adv = adv - adv.mean(axis=1, keepdims=True)
    v = jnp.maximum(h @ wv1 + bv1, 0.0) @ wv2 + bv2
    return v + adv


if __name__ == "__main__":
    input_size = 32
    output_size = 4

    key = jax.random.PRNGKey(0)
    kx, kp, kx2 = jax.random.split(key, 3)
    params = init_params(kp, input_size, output_size)
    w_slab, b_slab = pack_params(params, input_size, output_size)

    # Small batch (single 8-row tile, grid of 1).
    x = jax.random.normal(kx, (8, input_size), jnp.float32)
    q = jax.block_until_ready(duelnet_forward(x, w_slab, b_slab, output_size))
    q_ref = duelnet_ref(x, params)
    assert q.shape == (8, output_size)
    assert jnp.allclose(q, q_ref, atol=1e-4, rtol=1e-4), "small-batch mismatch"

    # Larger, non-multiple batch exercises the multi-step grid + row padding.
    x2 = jax.random.normal(kx2, (1000, input_size), jnp.float32)
    q2 = jax.block_until_ready(duelnet_forward(x2, w_slab, b_slab, output_size))
    q2_ref = duelnet_ref(x2, params)
    assert q2.shape == (1000, output_size)
    assert jnp.allclose(q2, q2_ref, atol=1e-4, rtol=1e-4), "large-batch mismatch"

    print("KERNEL_OK")
</pallas_src>

<mosaic_0001>
module attributes {stable_mosaic.version = 11 : i64} {
  func.func @duelnet_kernel(%arg0: i32, %arg1: memref<8x32xf32, #tpu.memory_space<vmem>>, %arg2: memref<3x128x128xf32, #tpu.memory_space<vmem>>, %arg3: memref<3x1x128xf32, #tpu.memory_space<vmem>>, %arg4: memref<8x4xf32, #tpu.memory_space<vmem>>) attributes {dimension_semantics = [#tpu.dimension_semantics<parallel>], iteration_bounds = array<i64: 1>, scalar_prefetch = 0 : i64, scratch_operands = 0 : i64, tpu.core_type = #tpu.core_type<tc>, window_params = [{transform_indices = @transform_0, window_bounds = array<i64: 8, 32>}, {pipeline_mode = #tpu.pipeline_mode<synchronous>, transform_indices = @transform_1, window_bounds = array<i64: 3, 128, 128>}, {pipeline_mode = #tpu.pipeline_mode<synchronous>, transform_indices = @transform_2, window_bounds = array<i64: 3, 1, 128>}, {transform_indices = @transform_3, window_bounds = array<i64: 8, 4>}]} {
    %c0 = arith.constant 0 : index
    %c0_0 = arith.constant 0 : index
    %0 = vector.load %arg1[%c0, %c0_0] : memref<8x32xf32, #tpu.memory_space<vmem>>, vector<8x32xf32>
    %c0_1 = arith.constant 0 : index
    %c0_2 = arith.constant 0 : index
    %c0_3 = arith.constant 0 : index
    %1 = vector.load %arg2[%c0_1, %c0_2, %c0_3] : memref<3x128x128xf32, #tpu.memory_space<vmem>>, vector<1x128x128xf32>
    %2 = vector.shape_cast %1 : vector<1x128x128xf32> to vector<128x128xf32>
    %3 = vector.extract_strided_slice %2 {offsets = [0, 0], sizes = [32, 128], strides = [1, 1]} : vector<128x128xf32> to vector<32x128xf32>
    %cst = arith.constant dense<0.000000e+00> : vector<8x128xf32>
    %4 = tpu.matmul %0, %3, %cst {dimension_numbers = #tpu.dot_dimension_numbers<[1], [0], [0], [1], [0, 0, 1, 1], [], []>, precision = #tpu.contract_precision<fp32>} : vector<8x32xf32>, vector<32x128xf32>, vector<8x128xf32> -> vector<8x128xf32>
    %c0_4 = arith.constant 0 : index
    %c0_5 = arith.constant 0 : index
    %c0_6 = arith.constant 0 : index
    %5 = vector.load %arg3[%c0_4, %c0_5, %c0_6] : memref<3x1x128xf32, #tpu.memory_space<vmem>>, vector<1x1x128xf32>
    %6 = vector.shape_cast %5 : vector<1x1x128xf32> to vector<1x128xf32>
    %7 = vector.broadcast %6 : vector<1x128xf32> to vector<8x128xf32>
    %8 = arith.addf %4, %7 : vector<8x128xf32>
    %cst_7 = arith.constant 0.000000e+00 : f32
    %9 = vector.broadcast %cst_7 : f32 to vector<8x128xf32>
    %10 = arith.maximumf %8, %9 : vector<8x128xf32>
    %c1 = arith.constant 1 : index
    %c0_8 = arith.constant 0 : index
    %c0_9 = arith.constant 0 : index
    %11 = vector.load %arg2[%c1, %c0_8, %c0_9] : memref<3x128x128xf32, #tpu.memory_space<vmem>>, vector<1x128x128xf32>
    %12 = vector.shape_cast %11 : vector<1x128x128xf32> to vector<128x128xf32>
    %cst_10 = arith.constant dense<0.000000e+00> : vector<8x128xf32>
    %13 = tpu.matmul %10, %12, %cst_10 {dimension_numbers = #tpu.dot_dimension_numbers<[1], [0], [0], [1], [0, 0, 1, 1], [], []>, precision = #tpu.contract_precision<fp32>} : vector<8x128xf32>, vector<128x128xf32>, vector<8x128xf32> -> vector<8x128xf32>
    %c1_11 = arith.constant 1 : index
    %c0_12 = arith.constant 0 : index
    %c0_13 = arith.constant 0 : index
    %14 = vector.load %arg3[%c1_11, %c0_12, %c0_13] : memref<3x1x128xf32, #tpu.memory_space<vmem>>, vector<1x1x128xf32>
    %15 = vector.shape_cast %14 : vector<1x1x128xf32> to vector<1x128xf32>
    %16 = vector.broadcast %15 : vector<1x128xf32> to vector<8x128xf32>
    %17 = arith.addf %13, %16 : vector<8x128xf32>
    %cst_14 = arith.constant 0.000000e+00 : f32
    %18 = vector.broadcast %cst_14 : f32 to vector<8x128xf32>
    %19 = arith.maximumf %17, %18 : vector<8x128xf32>
    %c2 = arith.constant 2 : index
    %c0_15 = arith.constant 0 : index
    %c0_16 = arith.constant 0 : index
    %20 = vector.load %arg2[%c2, %c0_15, %c0_16] : memref<3x128x128xf32, #tpu.memory_space<vmem>>, vector<1x128x128xf32>
    %21 = vector.shape_cast %20 : vector<1x128x128xf32> to vector<128x128xf32>
    %cst_17 = arith.constant dense<0.000000e+00> : vector<8x128xf32>
    %22 = tpu.matmul %19, %21, %cst_17 {dimension_numbers = #tpu.dot_dimension_numbers<[1], [0], [0], [1], [0, 0, 1, 1], [], []>, precision = #tpu.contract_precision<fp32>} : vector<8x128xf32>, vector<128x128xf32>, vector<8x128xf32> -> vector<8x128xf32>
    %c2_18 = arith.constant 2 : index
    %c0_19 = arith.constant 0 : index
    %c0_20 = arith.constant 0 : index
    %23 = vector.load %arg3[%c2_18, %c0_19, %c0_20] : memref<3x1x128xf32, #tpu.memory_space<vmem>>, vector<1x1x128xf32>
    %24 = vector.shape_cast %23 : vector<1x1x128xf32> to vector<1x128xf32>
    %25 = vector.broadcast %24 : vector<1x128xf32> to vector<8x128xf32>
    %26 = arith.addf %22, %25 : vector<8x128xf32>
    %27 = vector.extract_strided_slice %26 {offsets = [0, 0], sizes = [8, 4], strides = [1, 1]} : vector<8x128xf32> to vector<8x4xf32>
    %c0_21 = arith.constant 0 : index
    %c0_22 = arith.constant 0 : index
    %28 = vector.load %arg4[%c0_21, %c0_22] : memref<8x4xf32, #tpu.memory_space<vmem>>, vector<8x4xf32>
    tpu.vector_store %arg4[%c0_21, %c0_22], %27 {strides = array<i32>} : memref<8x4xf32, #tpu.memory_space<vmem>>, vector<8x4xf32>,
    return
  }
  func.func @transform_0(%arg0: i32) -> (i32, i32) {
    %c0_i32 = arith.constant 0 : i32
    %c0_i32_0 = arith.constant 0 : i32
    return %arg0, %c0_i32 : i32, i32
  }
  func.func @transform_1(%arg0: i32) -> (i32, i32, i32) {
    %c0_i32 = arith.constant 0 : i32
    %c0_i32_0 = arith.constant 0 : i32
    %c0_i32_1 = arith.constant 0 : i32
    %c0_i32_2 = arith.constant 0 : i32
    return %c0_i32, %c0_i32_0, %c0_i32_1 : i32, i32, i32
  }
  func.func @transform_2(%arg0: i32) -> (i32, i32, i32) {
    %c0_i32 = arith.constant 0 : i32
    %c0_i32_0 = arith.constant 0 : i32
    %c0_i32_1 = arith.constant 0 : i32
    %c0_i32_2 = arith.constant 0 : i32
    return %c0_i32, %c0_i32_0, %c0_i32_1 : i32, i32, i32
  }
  func.func @transform_3(%arg0: i32) -> (i32, i32) {
    %c0_i32 = arith.constant 0 : i32
    %c0_i32_0 = arith.constant 0 : i32
    return %arg0, %c0_i32 : i32, i32
  }
}

</mosaic_0001>

<llo_original>
// kernel: duelnet_forward.1
$region0: #{duelnet_forward.1}
  #allocation0 [shape = 'u32[]', space=smem, size = 0x4, offset = 0x4, fixed_abs, tag = 'smem constant byte address 0x4 - core index']
  #allocation1 [shape = 'u32[144,128]{1,0:T(1,128)}', space=vmem, size = 0x12000, scoped, tag = 'internal scratch']
  %s0 = inlined_call_operand.hbm [shape: f32[8,32], index: 0, kind: input, shape index: {}]
  %s1 = inlined_call_operand.hbm [shape: f32[3,128,128], index: 1, kind: input, shape index: {}]
  %s2 = inlined_call_operand.vmem [shape: f32[3,1,128], index: 2, kind: input, shape index: {}]
  %s3 = inlined_call_operand.vmem [shape: f32[8,4], index: 3, kind: output, shape index: {}]
  %s4 = sld [smem:[#allocation0]]
  $region30: #{duelnet_forward.1} parent=0
    _
  %s6 = ssub.s32 1, %s4
  %s7 = scalar_select 0, %s6, %s4
  $region1: #{duelnet_forward.1} parent=0
    #allocation2 [shape = 'u8[4096]{0}', space=vmem, size = 0x1000, scoped, tag = 'input window, operand 0, single buffered']
    #allocation3 [shape = 's32[1]{0}', space=sflag, size = 0x4, scoped, tag = 'scoped memory for duelnet_forward.1']
    #allocation4 [shape = 'u8[196608]{0}', space=vmem, size = 0x30000, scoped, tag = 'input window, operand 1, single buffered']
    #allocation5 [shape = 's32[1]{0}', space=sflag, size = 0x4, scoped, tag = 'scoped memory for duelnet_forward.1']
    %8 = vsyncpa [#allocation3], 0
    %9 = vsyncpa [#allocation5], 0
    // Predicated region
    $region2: #{duelnet_forward.1} parent=1 // pred_check
      _
    $region3: #{duelnet_forward.1} parent=1 // pred_check_branch
      %11 = sbr.rel (0) target = $region5
    $region4: #{duelnet_forward.1} parent=1 // pred_region
      %s13 = ssub.s32 128, 128
      %14 = vsyncadd [#allocation3], %s13
      %s16 = sshll.u32 [#allocation2], 4
      %s17 = int_to_ptr.vmem [resolvable:$true] %s16
      %19 = dma.hbm_to_vmem [thread:$0]  %s0, 128, %s17, [#allocation3]
    $region5: #{duelnet_forward.1} parent=1 // pred_fallthru
      _
    // Predicated region
    $region6: #{duelnet_forward.1} parent=1 // pred_check
      _
    $region7: #{duelnet_forward.1} parent=1 // pred_check_branch
      %21 = sbr.rel (0) target = $region9
    $region8: #{duelnet_forward.1} parent=1 // pred_region
      %s23 = ssub.s32 6144, 6144
      %24 = vsyncadd [#allocation5], %s23
      %s25 = sshll.u32 [#allocation4], 4
      %s26 = int_to_ptr.vmem [resolvable:$true] %s25
      %31 = dma.hbm_to_vmem [thread:$0]  %s1, 6144, %s26, [#allocation5], 128, 128, 8
    $region9: #{duelnet_forward.1} parent=1 // pred_fallthru
      _
    // Predicated region
    $region10: #{duelnet_forward.1} parent=1 // pred_check
      _
    $region11: #{duelnet_forward.1} parent=1 // pred_check_branch
      %33 = sbr.rel (0) target = $region13
    $region12: #{duelnet_forward.1} parent=1 // pred_region
      _
    $region13: #{duelnet_forward.1} parent=1 // pred_fallthru
      _
    // Predicated region
    $region14: #{duelnet_forward.1} parent=1 // pred_check
      _
    $region15: #{duelnet_forward.1} parent=1 // pred_check_branch
      %35 = sbr.rel (0) target = $region17
    $region16: #{duelnet_forward.1} parent=1 // pred_region
      %36 = dma.done [#allocation3], 128
    $region17: #{duelnet_forward.1} parent=1 // pred_fallthru
      _
    // Predicated region
    $region18: #{duelnet_forward.1} parent=1 // pred_check
      _
    $region19: #{duelnet_forward.1} parent=1 // pred_check_branch
      %38 = sbr.rel (0) target = $region21
    $region20: #{duelnet_forward.1} parent=1 // pred_region
      %39 = dma.done [#allocation5], 6144
    $region21: #{duelnet_forward.1} parent=1 // pred_fallthru
      _
    %v40 = vld [vmem:[#allocation2] sm:$0xff]
    %v41 = vld [vmem:[#allocation4] sm:$0xff]
    %v42 = vld [vmem:[#allocation4 + $0x8] sm:$0xff]
    %v43 = vld [vmem:[#allocation4 + $0x10] sm:$0xff]
    %v44 = vld [vmem:[#allocation4 + $0x18] sm:$0xff]
    %v45 = vld [vmem:[%s2] sm:$0x1]
    %v47 = vlaneseq
    %v48 = vshrl.u32 %v47, 7
    %v49 = vsub.s32 0, %v48
    %v50 = vrot.slane %v45, %v49
    %vm52 = vcmask 261120
    %v54 = vsel %vm52, %v40, 0
    %56 = vmatprep.subr.mxu0 0.0
    %57 = vmatpush1.msra.mxu0 0.0
    %58 = vmatprep.subr.mxu0 0.0
    %59 = vmatpush1.msra.mxu0 0.0
    %60 = vmatprep.subr.mxu0 0.0
    %61 = vmatpush1.msra.mxu0 0.0
    %62 = vmatprep.subr.mxu0 0.0
    %63 = vmatpush1.msra.mxu0 0.0
    %64 = vmatprep.subr.mxu0 0.0
    %65 = vmatpush1.msra.mxu0 0.0
    %66 = vmatprep.subr.mxu0 0.0
    %67 = vmatpush1.msra.mxu0 0.0
    %68 = vmatprep.subr.mxu0 0.0
    %69 = vmatpush1.msra.mxu0 0.0
    %70 = vmatprep.subr.mxu0 0.0
    %71 = vmatpush1.msra.mxu0 0.0
    %72 = vmatprep.subr.mxu0 0.0
    %73 = vmatpush1.msra.mxu0 0.0
    %74 = vmatprep.subr.mxu0 0.0
    %75 = vmatpush1.msra.mxu0 0.0
    %76 = vmatprep.subr.mxu0 0.0
    %77 = vmatpush1.msra.mxu0 0.0
    %78 = vmatprep.subr.mxu0 0.0
    %79 = vmatpush1.msra.mxu0 0.0
    %80 = vmatprep.subr.mxu0 0.0
    %v81 = vand.u32 %v44, 4294901760
    %82 = vmatpush1.msra.mxu0 %v81
    %83 = vmatprep.subr.mxu0 0.0
    %v84 = vand.u32 %v43, 4294901760
    %85 = vmatpush1.msra.mxu0 %v84
    %86 = vmatprep.subr.mxu0 0.0
    %v87 = vand.u32 %v42, 4294901760
    %88 = vmatpush1.msra.mxu0 %v87
    %89 = vmatprep.subr.mxu0 0.0
    %v90 = vand.u32 %v41, 4294901760
    %91 = vmatpush1.msra.mxu0 %v90
    %92 = vmatprep.subr.mxu0 0.0
    %93 = vmatpush2.msra.mxu0 0.0
    %94 = vmatprep.subr.mxu0 0.0
    %95 = vmatpush2.msra.mxu0 0.0
    %96 = vmatprep.subr.mxu0 0.0
    %97 = vmatpush2.msra.mxu0 0.0
    %98 = vmatprep.subr.mxu0 0.0
    %99 = vmatpush2.msra.mxu0 0.0
    %100 = vmatprep.subr.mxu0 0.0
    %101 = vmatpush2.msra.mxu0 0.0
    %102 = vmatprep.subr.mxu0 0.0
    %103 = vmatpush2.msra.mxu0 0.0
    %104 = vmatprep.subr.mxu0 0.0
    %105 = vmatpush2.msra.mxu0 0.0
    %106 = vmatprep.subr.mxu0 0.0
    %107 = vmatpush2.msra.mxu0 0.0
    %108 = vmatprep.subr.mxu0 0.0
    %109 = vmatpush2.msra.mxu0 0.0
    %110 = vmatprep.subr.mxu0 0.0
    %111 = vmatpush2.msra.mxu0 0.0
    %112 = vmatprep.subr.mxu0 0.0
    %113 = vmatpush2.msra.mxu0 0.0
    %114 = vmatprep.subr.mxu0 0.0
    %115 = vmatpush2.msra.mxu0 0.0
    %116 = vmatprep.subr.mxu0 0.0
    %117 = vmatpush2.msra.mxu0 0.0
    %118 = vmatprep.subr.mxu0 0.0
    %119 = vmatpush2.msra.mxu0 0.0
    %120 = vmatprep.subr.mxu0 0.0
    %121 = vmatpush2.msra.mxu0 0.0
    %122 = vmatprep.subr.mxu0 0.0
    %123 = vmatpush2.msra.mxu0 0.0
    %124 = vmatprep.mubr.f32.mxu0 0.0
    %v125 = vand.u32 %v54, 4294901760
    %v126 = vsub.f32 %v54, %v125
    %v127 = vand.u32 %v126, 4294901760
    %v128 = vsub.f32 %v126, %v127
    %v129 = vand.u32 %v128, 4294901760
    %130 = vmatmul.mubr.f32.gmra.mxu0 %v129
    %v131 = vpop.f32.mrf.mxu0
    %v132 = vadd.f32 %v50, %v131
    %v133 = vpop.f32.mrf.mxu0
    %134 = vdwg.mxu0
    %135 = vmatprep.subr.mxu0 0.0
    %136 = vmatpush1.msra.mxu0 0.0
    %137 = vmatprep.subr.mxu0 0.0
    %138 = vmatpush1.msra.mxu0 0.0
    %139 = vmatprep.subr.mxu0 0.0
    %140 = vmatpush1.msra.mxu0 0.0
    %141 = vmatprep.subr.mxu0 0.0
    %142 = vmatpush1.msra.mxu0 0.0
    %143 = vmatprep.subr.mxu0 0.0
    %144 = vmatpush1.msra.mxu0 0.0
    %145 = vmatprep.subr.mxu0 0.0
    %146 = vmatpush1.msra.mxu0 0.0
    %147 = vmatprep.subr.mxu0 0.0
    %148 = vmatpush1.msra.mxu0 0.0
    %149 = vmatprep.subr.mxu0 0.0
    %150 = vmatpush1.msra.mxu0 0.0
    %151 = vmatprep.subr.mxu0 0.0
    %152 = vmatpush1.msra.mxu0 0.0
    %153 = vmatprep.subr.mxu0 0.0
    %154 = vmatpush1.msra.mxu0 0.0
    %155 = vmatprep.subr.mxu0 0.0
    %156 = vmatpush1.msra.mxu0 0.0
    %157 = vmatprep.subr.mxu0 0.0
    %158 = vmatpush1.msra.mxu0 0.0
    %159 = vmatprep.subr.mxu0 0.0
    %v160 = vand.u32 %v44, 4294901760
    %v161 = vsub.f32 %v44, %v160
    %v162 = vand.u32 %v161, 4294901760
    %v163 = vsub.f32 %v161, %v162
    %v164 = vand.u32 %v163, 4294901760
    %165 = vmatpush1.msra.mxu0 %v164
    %166 = vmatprep.subr.mxu0 0.0
    %v167 = vand.u32 %v43, 4294901760
    %v168 = vsub.f32 %v43, %v167
    %v169 = vand.u32 %v168, 4294901760
    %v170 = vsub.f32 %v168, %v169
    %v171 = vand.u32 %v170, 4294901760
    %172 = vmatpush1.msra.mxu0 %v171
    %173 = vmatprep.subr.mxu0 0.0
    %v174 = vand.u32 %v42, 4294901760
    %v175 = vsub.f32 %v42, %v174
    %v176 = vand.u32 %v175, 4294901760
    %v177 = vsub.f32 %v175, %v176
    %v178 = vand.u32 %v177, 4294901760
    %179 = vmatpush1.msra.mxu0 %v178
    %180 = vmatprep.subr.mxu0 0.0
    %v181 = vand.u32 %v41, 4294901760
    %v182 = vsub.f32 %v41, %v181
    %v183 = vand.u32 %v182, 4294901760
    %v184 = vsub.f32 %v182, %v183
    %v185 = vand.u32 %v184, 4294901760
    %186 = vmatpush1.msra.mxu0 %v185
    %187 = vmatprep.subr.mxu0 0.0
    %188 = vmatpush2.msra.mxu0 0.0
    %189 = vmatprep.subr.mxu0 0.0
    %190 = vmatpush2.msra.mxu0 0.0
    %191 = vmatprep.subr.mxu0 0.0
    %192 = vmatpush2.msra.mxu0 0.0
    %193 = vmatprep.subr.mxu0 0.0
    %194 = vmatpush2.msra.mxu0 0.0
    %195 = vmatprep.subr.mxu0 0.0
    %196 = vmatpush2.msra.mxu0 0.0
    %197 = vmatprep.subr.mxu0 0.0
    %198 = vmatpush2.msra.mxu0 0.0
    %199 = vmatprep.subr.mxu0 0.0
    %200 = vmatpush2.msra.mxu0 0.0
    %201 = vmatprep.subr.mxu0 0.0
    %202 = vmatpush2.msra.mxu0 0.0
    %203 = vmatprep.subr.mxu0 0.0
    %204 = vmatpush2.msra.mxu0 0.0
    %205 = vmatprep.subr.mxu0 0.0
    %206 = vmatpush2.msra.mxu0 0.0
    %207 = vmatprep.subr.mxu0 0.0
    %208 = vmatpush2.msra.mxu0 0.0
    %209 = vmatprep.subr.mxu0 0.0
    %210 = vmatpush2.msra.mxu0 0.0
    %211 = vmatprep.subr.mxu0 0.0
    %212 = vmatpush2.msra.mxu0 0.0
    %213 = vmatprep.subr.mxu0 0.0
    %214 = vmatpush2.msra.mxu0 0.0
    %215 = vmatprep.subr.mxu0 0.0
    %216 = vmatpush2.msra.mxu0 0.0
    %217 = vmatprep.subr.mxu0 0.0
    %218 = vmatpush2.msra.mxu0 0.0
    %219 = vmatprep.mubr.f32.mxu0 0.0
    %v220 = vand.u32 %v54, 4294901760
    %221 = vmatmul.mubr.f32.gmra.mxu0 %v220
    %v222 = vpop.f32.mrf.mxu0
    %v223 = vadd.f32 %v132, %v222
    %v224 = vpop.f32.mrf.mxu0
    %225 = vdwg.mxu0
    %226 = vmatprep.subr.mxu0 0.0
    %227 = vmatpush1.msra.mxu0 0.0
    %228 = vmatprep.subr.mxu0 0.0
    %229 = vmatpush1.msra.mxu0 0.0
    %230 = vmatprep.subr.mxu0 0.0
    %231 = vmatpush1.msra.mxu0 0.0
    %232 = vmatprep.subr.mxu0 0.0
    %233 = vmatpush1.msra.mxu0 0.0
    %234 = vmatprep.subr.mxu0 0.0
    %235 = vmatpush1.msra.mxu0 0.0
    %236 = vmatprep.subr.mxu0 0.0
    %237 = vmatpush1.msra.mxu0 0.0
    %238 = vmatprep.subr.mxu0 0.0
    %239 = vmatpush1.msra.mxu0 0.0
    %240 = vmatprep.subr.mxu0 0.0
    %241 = vmatpush1.msra.mxu0 0.0
    %242 = vmatprep.subr.mxu0 0.0
    %243 = vmatpush1.msra.mxu0 0.0
    %244 = vmatprep.subr.mxu0 0.0
    %245 = vmatpush1.msra.mxu0 0.0
    %246 = vmatprep.subr.mxu0 0.0
    %247 = vmatpush1.msra.mxu0 0.0
    %248 = vmatprep.subr.mxu0 0.0
    %249 = vmatpush1.msra.mxu0 0.0
    %250 = vmatprep.subr.mxu0 0.0
    %v251 = vand.u32 %v44, 4294901760
    %v252 = vsub.f32 %v44, %v251
    %253 = vmatpush1.msra.mxu0 %v252
    %254 = vmatprep.subr.mxu0 0.0
    %v255 = vand.u32 %v43, 4294901760
    %v256 = vsub.f32 %v43, %v255
    %257 = vmatpush1.msra.mxu0 %v256
    %258 = vmatprep.subr.mxu0 0.0
    %v259 = vand.u32 %v42, 4294901760
    %v260 = vsub.f32 %v42, %v259
    %261 = vmatpush1.msra.mxu0 %v260
    %262 = vmatprep.subr.mxu0 0.0
    %v263 = vand.u32 %v41, 4294901760
    %v264 = vsub.f32 %v41, %v263
    %265 = vmatpush1.msra.mxu0 %v264
    %266 = vmatprep.subr.mxu0 0.0
    %267 = vmatpush2.msra.mxu0 0.0
    %268 = vmatprep.subr.mxu0 0.0
    %269 = vmatpush2.msra.mxu0 0.0
    %270 = vmatprep.subr.mxu0 0.0
    %271 = vmatpush2.msra.mxu0 0.0
    %272 = vmatprep.subr.mxu0 0.0
    %273 = vmatpush2.msra.mxu0 0.0
    %274 = vmatprep.subr.mxu0 0.0
    %275 = vmatpush2.msra.mxu0 0.0
    %276 = vmatprep.subr.mxu0 0.0
    %277 = vmatpush2.msra.mxu0 0.0
    %278 = vmatprep.subr.mxu0 0.0
    %279 = vmatpush2.msra.mxu0 0.0
    %280 = vmatprep.subr.mxu0 0.0
    %281 = vmatpush2.msra.mxu0 0.0
    %282 = vmatprep.subr.mxu0 0.0
    %283 = vmatpush2.msra.mxu0 0.0
    %284 = vmatprep.subr.mxu0 0.0
    %285 = vmatpush2.msra.mxu0 0.0
    %286 = vmatprep.subr.mxu0 0.0
    %287 = vmatpush2.msra.mxu0 0.0
    %288 = vmatprep.subr.mxu0 0.0
    %289 = vmatpush2.msra.mxu0 0.0
    %290 = vmatprep.subr.mxu0 0.0
    %291 = vmatpush2.msra.mxu0 0.0
    %292 = vmatprep.subr.mxu0 0.0
    %293 = vmatpush2.msra.mxu0 0.0
    %294 = vmatprep.subr.mxu0 0.0
    %295 = vmatpush2.msra.mxu0 0.0
    %296 = vmatprep.subr.mxu0 0.0
    %297 = vmatpush2.msra.mxu0 0.0
    %298 = vmatprep.mubr.f32.mxu0 0.0
    %v299 = vand.u32 %v54, 4294901760
    %v300 = vsub.f32 %v54, %v299
    %301 = vmatmul.mubr.f32.gmra.mxu0 %v300
    %v302 = vpop.f32.mrf.mxu0
    %v303 = vadd.f32 %v223, %v302
    %v304 = vpop.f32.mrf.mxu0
    %305 = vdwg.mxu0
    %306 = vmatprep.subr.mxu0 0.0
    %307 = vmatpush1.msra.mxu0 0.0
    %308 = vmatprep.subr.mxu0 0.0
    %309 = vmatpush1.msra.mxu0 0.0
    %310 = vmatprep.subr.mxu0 0.0
    %311 = vmatpush1.msra.mxu0 0.0
    %312 = vmatprep.subr.mxu0 0.0
    %313 = vmatpush1.msra.mxu0 0.0
    %314 = vmatprep.subr.mxu0 0.0
    %315 = vmatpush1.msra.mxu0 0.0
    %316 = vmatprep.subr.mxu0 0.0
    %317 = vmatpush1.msra.mxu0 0.0
    %318 = vmatprep.subr.mxu0 0.0
    %319 = vmatpush1.msra.mxu0 0.0
    %320 = vmatprep.subr.mxu0 0.0
    %321 = vmatpush1.msra.mxu0 0.0
    %322 = vmatprep.subr.mxu0 0.0
    %323 = vmatpush1.msra.mxu0 0.0
    %324 = vmatprep.subr.mxu0 0.0
    %325 = vmatpush1.msra.mxu0 0.0
    %326 = vmatprep.subr.mxu0 0.0
    %327 = vmatpush1.msra.mxu0 0.0
    %328 = vmatprep.subr.mxu0 0.0
    %329 = vmatpush1.msra.mxu0 0.0
    %330 = vmatprep.subr.mxu0 0.0
    %v331 = vand.u32 %v44, 4294901760
    %332 = vmatpush1.msra.mxu0 %v331
    %333 = vmatprep.subr.mxu0 0.0
    %v334 = vand.u32 %v43, 4294901760
    %335 = vmatpush1.msra.mxu0 %v334
    %336 = vmatprep.subr.mxu0 0.0
    %v337 = vand.u32 %v42, 4294901760
    %338 = vmatpush1.msra.mxu0 %v337
    %339 = vmatprep.subr.mxu0 0.0
    %v340 = vand.u32 %v41, 4294901760
    %341 = vmatpush1.msra.mxu0 %v340
    %342 = vmatprep.subr.mxu0 0.0
    %343 = vmatpush2.msra.mxu0 0.0
    %344 = vmatprep.subr.mxu0 0.0
    %345 = vmatpush2.msra.mxu0 0.0
    %346 = vmatprep.subr.mxu0 0.0
    %347 = vmatpush2.msra.mxu0 0.0
    %348 = vmatprep.subr.mxu0 0.0
    %349 = vmatpush2.msra.mxu0 0.0
    %350 = vmatprep.subr.mxu0 0.0
    %351 = vmatpush2.msra.mxu0 0.0
    %352 = vmatprep.subr.mxu0 0.0
    %353 = vmatpush2.msra.mxu0 0.0
    %354 = vmatprep.subr.mxu0 0.0
    %355 = vmatpush2.msra.mxu0 0.0
    %356 = vmatprep.subr.mxu0 0.0
    %357 = vmatpush2.msra.mxu0 0.0
    %358 = vmatprep.subr.mxu0 0.0
    %359 = vmatpush2.msra.mxu0 0.0
    %360 = vmatprep.subr.mxu0 0.0
    %361 = vmatpush2.msra.mxu0 0.0
    %362 = vmatprep.subr.mxu0 0.0
    %363 = vmatpush2.msra.mxu0 0.0
    %364 = vmatprep.subr.mxu0 0.0
    %365 = vmatpush2.msra.mxu0 0.0
    %366 = vmatprep.subr.mxu0 0.0
    %367 = vmatpush2.msra.mxu0 0.0
    %368 = vmatprep.subr.mxu0 0.0
    %369 = vmatpush2.msra.mxu0 0.0
    %370 = vmatprep.subr.mxu0 0.0
    %371 = vmatpush2.msra.mxu0 0.0
    %372 = vmatprep.subr.mxu0 0.0
    %373 = vmatpush2.msra.mxu0 0.0
    %374 = vmatprep.mubr.f32.mxu0 0.0
    %v375 = vand.u32 %v54, 4294901760
    %v376 = vsub.f32 %v54, %v375
    %v377 = vand.u32 %v376, 4294901760
    %378 = vmatmul.mubr.f32.gmra.mxu0 %v377
    %v379 = vpop.f32.mrf.mxu0
    %v380 = vadd.f32 %v303, %v379
    %v381 = vpop.f32.mrf.mxu0
    %382 = vdwg.mxu0
    %383 = vmatprep.subr.mxu0 0.0
    %384 = vmatpush1.msra.mxu0 0.0
    %385 = vmatprep.subr.mxu0 0.0
    %386 = vmatpush1.msra.mxu0 0.0
    %387 = vmatprep.subr.mxu0 0.0
    %388 = vmatpush1.msra.mxu0 0.0
    %389 = vmatprep.subr.mxu0 0.0
    %390 = vmatpush1.msra.mxu0 0.0
    %391 = vmatprep.subr.mxu0 0.0
    %392 = vmatpush1.msra.mxu0 0.0
    %393 = vmatprep.subr.mxu0 0.0
    %394 = vmatpush1.msra.mxu0 0.0
    %395 = vmatprep.subr.mxu0 0.0
    %396 = vmatpush1.msra.mxu0 0.0
    %397 = vmatprep.subr.mxu0 0.0
    %398 = vmatpush1.msra.mxu0 0.0
    %399 = vmatprep.subr.mxu0 0.0
    %400 = vmatpush1.msra.mxu0 0.0
    %401 = vmatprep.subr.mxu0 0.0
    %402 = vmatpush1.msra.mxu0 0.0
    %403 = vmatprep.subr.mxu0 0.0
    %404 = vmatpush1.msra.mxu0 0.0
    %405 = vmatprep.subr.mxu0 0.0
    %406 = vmatpush1.msra.mxu0 0.0
    %407 = vmatprep.subr.mxu0 0.0
    %v408 = vand.u32 %v44, 4294901760
    %v409 = vsub.f32 %v44, %v408
    %v410 = vand.u32 %v409, 4294901760
    %411 = vmatpush1.msra.mxu0 %v410
    %412 = vmatprep.subr.mxu0 0.0
    %v413 = vand.u32 %v43, 4294901760
    %v414 = vsub.f32 %v43, %v413
    %v415 = vand.u32 %v414, 4294901760
    %416 = vmatpush1.msra.mxu0 %v415
    %417 = vmatprep.subr.mxu0 0.0
    %v418 = vand.u32 %v42, 4294901760
    %v419 = vsub.f32 %v42, %v418
    %v420 = vand.u32 %v419, 4294901760
    %421 = vmatpush1.msra.mxu0 %v420
    %422 = vmatprep.subr.mxu0 0.0
    %v423 = vand.u32 %v41, 4294901760
    %v424 = vsub.f32 %v41, %v423
    %v425 = vand.u32 %v424, 4294901760
    %426 = vmatpush1.msra.mxu0 %v425
    %427 = vmatprep.subr.mxu0 0.0
    %428 = vmatpush2.msra.mxu0 0.0
    %429 = vmatprep.subr.mxu0 0.0
    %430 = vmatpush2.msra.mxu0 0.0
    %431 = vmatprep.subr.mxu0 0.0
    %432 = vmatpush2.msra.mxu0 0.0
    %433 = vmatprep.subr.mxu0 0.0
    %434 = vmatpush2.msra.mxu0 0.0
    %435 = vmatprep.subr.mxu0 0.0
    %436 = vmatpush2.msra.mxu0 0.0
    %437 = vmatprep.subr.mxu0 0.0
    %438 = vmatpush2.msra.mxu0 0.0
    %439 = vmatprep.subr.mxu0 0.0
    %440 = vmatpush2.msra.mxu0 0.0
    %441 = vmatprep.subr.mxu0 0.0
    %442 = vmatpush2.msra.mxu0 0.0
    %443 = vmatprep.subr.mxu0 0.0
    %444 = vmatpush2.msra.mxu0 0.0
    %445 = vmatprep.subr.mxu0 0.0
    %446 = vmatpush2.msra.mxu0 0.0
    %447 = vmatprep.subr.mxu0 0.0
    %448 = vmatpush2.msra.mxu0 0.0
    %449 = vmatprep.subr.mxu0 0.0
    %450 = vmatpush2.msra.mxu0 0.0
    %451 = vmatprep.subr.mxu0 0.0
    %452 = vmatpush2.msra.mxu0 0.0
    %453 = vmatprep.subr.mxu0 0.0
    %454 = vmatpush2.msra.mxu0 0.0
    %455 = vmatprep.subr.mxu0 0.0
    %456 = vmatpush2.msra.mxu0 0.0
    %457 = vmatprep.subr.mxu0 0.0
    %458 = vmatpush2.msra.mxu0 0.0
    %459 = vmatprep.mubr.f32.mxu0 0.0
    %v460 = vand.u32 %v54, 4294901760
    %461 = vmatmul.mubr.f32.gmra.mxu0 %v460
    %v462 = vpop.f32.mrf.mxu0
    %v463 = vadd.f32 %v380, %v462
    %v464 = vpop.f32.mrf.mxu0
    %465 = vdwg.mxu0
    %466 = vmatprep.subr.mxu0 0.0
    %467 = vmatpush1.msra.mxu0 0.0
    %468 = vmatprep.subr.mxu0 0.0
    %469 = vmatpush1.msra.mxu0 0.0
    %470 = vmatprep.subr.mxu0 0.0
    %471 = vmatpush1.msra.mxu0 0.0
    %472 = vmatprep.subr.mxu0 0.0
    %473 = vmatpush1.msra.mxu0 0.0
    %474 = vmatprep.subr.mxu0 0.0
    %475 = vmatpush1.msra.mxu0 0.0
    %476 = vmatprep.subr.mxu0 0.0
    %477 = vmatpush1.msra.mxu0 0.0
    %478 = vmatprep.subr.mxu0 0.0
    %479 = vmatpush1.msra.mxu0 0.0
    %480 = vmatprep.subr.mxu0 0.0
    %481 = vmatpush1.msra.mxu0 0.0
    %482 = vmatprep.subr.mxu0 0.0
    %483 = vmatpush1.msra.mxu0 0.0
    %484 = vmatprep.subr.mxu0 0.0
    %485 = vmatpush1.msra.mxu0 0.0
    %486 = vmatprep.subr.mxu0 0.0
    %487 = vmatpush1.msra.mxu0 0.0
    %488 = vmatprep.subr.mxu0 0.0
    %489 = vmatpush1.msra.mxu0 0.0
    %490 = vmatprep.subr.mxu0 0.0
    %v491 = vand.u32 %v44, 4294901760
    %492 = vmatpush1.msra.mxu0 %v491
    %493 = vmatprep.subr.mxu0 0.0
    %v494 = vand.u32 %v43, 4294901760
    %495 = vmatpush1.msra.mxu0 %v494
    %496 = vmatprep.subr.mxu0 0.0
    %v497 = vand.u32 %v42, 4294901760
    %498 = vmatpush1.msra.mxu0 %v497
    %499 = vmatprep.subr.mxu0 0.0
    %v500 = vand.u32 %v41, 4294901760
    %501 = vmatpush1.msra.mxu0 %v500
    %502 = vmatprep.subr.mxu0 0.0
    %503 = vmatpush2.msra.mxu0 0.0
    %504 = vmatprep.subr.mxu0 0.0
    %505 = vmatpush2.msra.mxu0 0.0
    %506 = vmatprep.subr.mxu0 0.0
    %507 = vmatpush2.msra.mxu0 0.0
    %508 = vmatprep.subr.mxu0 0.0
    %509 = vmatpush2.msra.mxu0 0.0
    %510 = vmatprep.subr.mxu0 0.0
    %511 = vmatpush2.msra.mxu0 0.0
    %512 = vmatprep.subr.mxu0 0.0
    %513 = vmatpush2.msra.mxu0 0.0
    %514 = vmatprep.subr.mxu0 0.0
    %515 = vmatpush2.msra.mxu0 0.0
    %516 = vmatprep.subr.mxu0 0.0
    %517 = vmatpush2.msra.mxu0 0.0
    %518 = vmatprep.subr.mxu0 0.0
    %519 = vmatpush2.msra.mxu0 0.0
    %520 = vmatprep.subr.mxu0 0.0
    %521 = vmatpush2.msra.mxu0 0.0
    %522 = vmatprep.subr.mxu0 0.0
    %523 = vmatpush2.msra.mxu0 0.0
    %524 = vmatprep.subr.mxu0 0.0
    %525 = vmatpush2.msra.mxu0 0.0
    %526 = vmatprep.subr.mxu0 0.0
    %527 = vmatpush2.msra.mxu0 0.0
    %528 = vmatprep.subr.mxu0 0.0
    %529 = vmatpush2.msra.mxu0 0.0
    %530 = vmatprep.subr.mxu0 0.0
    %531 = vmatpush2.msra.mxu0 0.0
    %532 = vmatprep.subr.mxu0 0.0
    %533 = vmatpush2.msra.mxu0 0.0
    %534 = vmatprep.mubr.f32.mxu0 0.0
    %v535 = vand.u32 %v54, 4294901760
    %536 = vmatmul.mubr.f32.gmra.mxu0 %v535
    %v537 = vpop.f32.mrf.mxu0
    %v538 = vadd.f32 %v463, %v537
    %v539 = vpop.f32.mrf.mxu0
    %540 = vdwg.mxu0
    %v541 = vmax.f32 %v538, 0.0
    %s542 = scalar_lea.vmem [#allocation4], 128
    %v543 = vld [vmem:[%s542] sm:$0xff]
    %v544 = vld [vmem:[%s542 + $0x8] sm:$0xff]
    %v545 = vld [vmem:[%s542 + $0x10] sm:$0xff]
    %v546 = vld [vmem:[%s542 + $0x18] sm:$0xff]
    %v547 = vld [vmem:[%s542 + $0x20] sm:$0xff]
    %v548 = vld [vmem:[%s542 + $0x28] sm:$0xff]
    %v549 = vld [vmem:[%s542 + $0x30] sm:$0xff]
    %v550 = vld [vmem:[%s542 + $0x38] sm:$0xff]
    %v551 = vld [vmem:[%s542 + $0x40] sm:$0xff]
    %v552 = vld [vmem:[%s542 + $0x48] sm:$0xff]
    %v553 = vld [vmem:[%s542 + $0x50] sm:$0xff]
    %v554 = vld [vmem:[%s542 + $0x58] sm:$0xff]
    %v555 = vld [vmem:[%s542 + $0x60] sm:$0xff]
    %v556 = vld [vmem:[%s542 + $0x68] sm:$0xff]
    %v557 = vld [vmem:[%s542 + $0x70] sm:$0xff]
    %v558 = vld [vmem:[%s542 + $0x78] sm:$0xff]
    %s559 = scalar_lea.vmem %s2, 1
    %v560 = vld [vmem:[%s559] sm:$0x1]
    %v562 = vlaneseq
    %v563 = vshrl.u32 %v562, 7
    %v564 = vsub.s32 0, %v563
    %v565 = vrot.slane %v560, %v564
    %567 = vmatprep.subr.mxu0 0.0
    %v568 = vand.u32 %v558, 4294901760
    %569 = vmatpush1.msra.mxu0 %v568
    %570 = vmatprep.subr.mxu0 0.0
    %v571 = vand.u32 %v557, 4294901760
    %572 = vmatpush1.msra.mxu0 %v571
    %573 = vmatprep.subr.mxu0 0.0
    %v574 = vand.u32 %v556, 4294901760
    %575 = vmatpush1.msra.mxu0 %v574
    %576 = vmatprep.subr.mxu0 0.0
    %v577 = vand.u32 %v555, 4294901760
    %578 = vmatpush1.msra.mxu0 %v577
    %579 = vmatprep.subr.mxu0 0.0
    %v580 = vand.u32 %v554, 4294901760
    %581 = vmatpush1.msra.mxu0 %v580
    %582 = vmatprep.subr.mxu0 0.0
    %v583 = vand.u32 %v553, 4294901760
    %584 = vmatpush1.msra.mxu0 %v583
    %585 = vmatprep.subr.mxu0 0.0
    %v586 = vand.u32 %v552, 4294901760
    %587 = vmatpush1.msra.mxu0 %v586
    %588 = vmatprep.subr.mxu0 0.0
    %v589 = vand.u32 %v551, 4294901760
    %590 = vmatpush1.msra.mxu0 %v589
    %591 = vmatprep.subr.mxu0 0.0
    %v592 = vand.u32 %v550, 4294901760
    %593 = vmatpush1.msra.mxu0 %v592
    %594 = vmatprep.subr.mxu0 0.0
    %v595 = vand.u32 %v549, 4294901760
    %596 = vmatpush1.msra.mxu0 %v595
    %597 = vmatprep.subr.mxu0 0.0
    %v598 = vand.u32 %v548, 4294901760
    %599 = vmatpush1.msra.mxu0 %v598
    %600 = vmatprep.subr.mxu0 0.0
    %v601 = vand.u32 %v547, 4294901760
    %602 = vmatpush1.msra.mxu0 %v601
    %603 = vmatprep.subr.mxu0 0.0
    %v604 = vand.u32 %v546, 4294901760
    %605 = vmatpush1.msra.mxu0 %v604
    %606 = vmatprep.subr.mxu0 0.0
    %v607 = vand.u32 %v545, 4294901760
    %608 = vmatpush1.msra.mxu0 %v607
    %609 = vmatprep.subr.mxu0 0.0
    %v610 = vand.u32 %v544, 4294901760
    %611 = vmatpush1.msra.mxu0 %v610
    %612 = vmatprep.subr.mxu0 0.0
    %v613 = vand.u32 %v543, 4294901760
    %614 = vmatpush1.msra.mxu0 %v613
    %615 = vmatprep.subr.mxu0 0.0
    %616 = vmatpush2.msra.mxu0 0.0
    %617 = vmatprep.subr.mxu0 0.0
    %618 = vmatpush2.msra.mxu0 0.0
    %619 = vmatprep.subr.mxu0 0.0
    %620 = vmatpush2.msra.mxu0 0.0
    %621 = vmatprep.subr.mxu0 0.0
    %622 = vmatpush2.msra.mxu0 0.0
    %623 = vmatprep.subr.mxu0 0.0
    %624 = vmatpush2.msra.mxu0 0.0
    %625 = vmatprep.subr.mxu0 0.0
    %626 = vmatpush2.msra.mxu0 0.0
    %627 = vmatprep.subr.mxu0 0.0
    %628 = vmatpush2.msra.mxu0 0.0
    %629 = vmatprep.subr.mxu0 0.0
    %630 = vmatpush2.msra.mxu0 0.0
    %631 = vmatprep.subr.mxu0 0.0
    %632 = vmatpush2.msra.mxu0 0.0
    %633 = vmatprep.subr.mxu0 0.0
    %634 = vmatpush2.msra.mxu0 0.0
    %635 = vmatprep.subr.mxu0 0.0
    %636 = vmatpush2.msra.mxu0 0.0
    %637 = vmatprep.subr.mxu0 0.0
    %638 = vmatpush2.msra.mxu0 0.0
    %639 = vmatprep.subr.mxu0 0.0
    %640 = vmatpush2.msra.mxu0 0.0
    %641 = vmatprep.subr.mxu0 0.0
    %642 = vmatpush2.msra.mxu0 0.0
    %643 = vmatprep.subr.mxu0 0.0
    %644 = vmatpush2.msra.mxu0 0.0
    %645 = vmatprep.subr.mxu0 0.0
    %646 = vmatpush2.msra.mxu0 0.0
    %647 = vmatprep.mubr.f32.mxu0 0.0
    %v648 = vand.u32 %v541, 4294901760
    %v649 = vsub.f32 %v541, %v648
    %v650 = vand.u32 %v649, 4294901760
    %v651 = vsub.f32 %v649, %v650
    %v652 = vand.u32 %v651, 4294901760
    %653 = vmatmul.mubr.f32.gmra.mxu0 %v652
    %v654 = vpop.f32.mrf.mxu0
    %v655 = vadd.f32 %v565, %v654
    %v656 = vpop.f32.mrf.mxu0
    %657 = vdwg.mxu0
    %658 = vmatprep.subr.mxu0 0.0
    %v659 = vand.u32 %v558, 4294901760
    %v660 = vsub.f32 %v558, %v659
    %v661 = vand.u32 %v660, 4294901760
    %v662 = vsub.f32 %v660, %v661
    %v663 = vand.u32 %v662, 4294901760
    %664 = vmatpush1.msra.mxu0 %v663
    %665 = vmatprep.subr.mxu0 0.0
    %v666 = vand.u32 %v557, 4294901760
    %v667 = vsub.f32 %v557, %v666
    %v668 = vand.u32 %v667, 4294901760
    %v669 = vsub.f32 %v667, %v668
    %v670 = vand.u32 %v669, 4294901760
    %671 = vmatpush1.msra.mxu0 %v670
    %672 = vmatprep.subr.mxu0 0.0
    %v673 = vand.u32 %v556, 4294901760
    %v674 = vsub.f32 %v556, %v673
    %v675 = vand.u32 %v674, 4294901760
    %v676 = vsub.f32 %v674, %v675
    %v677 = vand.u32 %v676, 4294901760
    %678 = vmatpush1.msra.mxu0 %v677
    %679 = vmatprep.subr.mxu0 0.0
    %v680 = vand.u32 %v555, 4294901760
    %v681 = vsub.f32 %v555, %v680
    %v682 = vand.u32 %v681, 4294901760
    %v683 = vsub.f32 %v681, %v682
    %v684 = vand.u32 %v683, 4294901760
    %685 = vmatpush1.msra.mxu0 %v684
    %686 = vmatprep.subr.mxu0 0.0
    %v687 = vand.u32 %v554, 4294901760
    %v688 = vsub.f32 %v554, %v687
    %v689 = vand.u32 %v688, 4294901760
    %v690 = vsub.f32 %v688, %v689
    %v691 = vand.u32 %v690, 4294901760
    %692 = vmatpush1.msra.mxu0 %v691
    %693 = vmatprep.subr.mxu0 0.0
    %v694 = vand.u32 %v553, 4294901760
    %v695 = vsub.f32 %v553, %v694
    %v696 = vand.u32 %v695, 4294901760
    %v697 = vsub.f32 %v695, %v696
    %v698 = vand.u32 %v697, 4294901760
    %699 = vmatpush1.msra.mxu0 %v698
    %700 = vmatprep.subr.mxu0 0.0
    %v701 = vand.u32 %v552, 4294901760
    %v702 = vsub.f32 %v552, %v701
    %v703 = vand.u32 %v702, 4294901760
    %v704 = vsub.f32 %v702, %v703
    %v705 = vand.u32 %v704, 4294901760
    %706 = vmatpush1.msra.mxu0 %v705
    %707 = vmatprep.subr.mxu0 0.0
    %v708 = vand.u32 %v551, 4294901760
    %v709 = vsub.f32 %v551, %v708
    %v710 = vand.u32 %v709, 4294901760
    %v711 = vsub.f32 %v709, %v710
    %v712 = vand.u32 %v711, 4294901760
    %713 = vmatpush1.msra.mxu0 %v712
    %714 = vmatprep.subr.mxu0 0.0
    %v715 = vand.u32 %v550, 4294901760
    %v716 = vsub.f32 %v550, %v715
    %v717 = vand.u32 %v716, 4294901760
    %v718 = vsub.f32 %v716, %v717
    %v719 = vand.u32 %v718, 4294901760
    %720 = vmatpush1.msra.mxu0 %v719
    %721 = vmatprep.subr.mxu0 0.0
    %v722 = vand.u32 %v549, 4294901760
    %v723 = vsub.f32 %v549, %v722
    %v724 = vand.u32 %v723, 4294901760
    %v725 = vsub.f32 %v723, %v724
    %v726 = vand.u32 %v725, 4294901760
    %727 = vmatpush1.msra.mxu0 %v726
    %728 = vmatprep.subr.mxu0 0.0
    %v729 = vand.u32 %v548, 4294901760
    %v730 = vsub.f32 %v548, %v729
    %v731 = vand.u32 %v730, 4294901760
    %v732 = vsub.f32 %v730, %v731
    %v733 = vand.u32 %v732, 4294901760
    %734 = vmatpush1.msra.mxu0 %v733
    %735 = vmatprep.subr.mxu0 0.0
    %v736 = vand.u32 %v547, 4294901760
    %v737 = vsub.f32 %v547, %v736
    %v738 = vand.u32 %v737, 4294901760
    %v739 = vsub.f32 %v737, %v738
    %v740 = vand.u32 %v739, 4294901760
    %741 = vmatpush1.msra.mxu0 %v740
    %742 = vmatprep.subr.mxu0 0.0
    %v743 = vand.u32 %v546, 4294901760
    %v744 = vsub.f32 %v546, %v743
    %v745 = vand.u32 %v744, 4294901760
    %v746 = vsub.f32 %v744, %v745
    %v747 = vand.u32 %v746, 4294901760
    %748 = vmatpush1.msra.mxu0 %v747
    %749 = vmatprep.subr.mxu0 0.0
    %v750 = vand.u32 %v545, 4294901760
    %v751 = vsub.f32 %v545, %v750
    %v752 = vand.u32 %v751, 4294901760
    %v753 = vsub.f32 %v751, %v752
    %v754 = vand.u32 %v753, 4294901760
    %755 = vmatpush1.msra.mxu0 %v754
    %756 = vmatprep.subr.mxu0 0.0
    %v757 = vand.u32 %v544, 4294901760
    %v758 = vsub.f32 %v544, %v757
    %v759 = vand.u32 %v758, 4294901760
    %v760 = vsub.f32 %v758, %v759
    %v761 = vand.u32 %v760, 4294901760
    %762 = vmatpush1.msra.mxu0 %v761
    %763 = vmatprep.subr.mxu0 0.0
    %v764 = vand.u32 %v543, 4294901760
    %v765 = vsub.f32 %v543, %v764
    %v766 = vand.u32 %v765, 4294901760
    %v767 = vsub.f32 %v765, %v766
    %v768 = vand.u32 %v767, 4294901760
    %769 = vmatpush1.msra.mxu0 %v768
    %770 = vmatprep.subr.mxu0 0.0
    %771 = vmatpush2.msra.mxu0 0.0
    %772 = vmatprep.subr.mxu0 0.0
    %773 = vmatpush2.msra.mxu0 0.0
    %774 = vmatprep.subr.mxu0 0.0
    %775 = vmatpush2.msra.mxu0 0.0
    %776 = vmatprep.subr.mxu0 0.0
    %777 = vmatpush2.msra.mxu0 0.0
    %778 = vmatprep.subr.mxu0 0.0
    %779 = vmatpush2.msra.mxu0 0.0
    %780 = vmatprep.subr.mxu0 0.0
    %781 = vmatpush2.msra.mxu0 0.0
    %782 = vmatprep.subr.mxu0 0.0
    %783 = vmatpush2.msra.mxu0 0.0
    %784 = vmatprep.subr.mxu0 0.0
    %785 = vmatpush2.msra.mxu0 0.0
    %786 = vmatprep.subr.mxu0 0.0
    %787 = vmatpush2.msra.mxu0 0.0
    %788 = vmatprep.subr.mxu0 0.0
    %789 = vmatpush2.msra.mxu0 0.0
    %790 = vmatprep.subr.mxu0 0.0
    %791 = vmatpush2.msra.mxu0 0.0
    %792 = vmatprep.subr.mxu0 0.0
    %793 = vmatpush2.msra.mxu0 0.0
    %794 = vmatprep.subr.mxu0 0.0
    %795 = vmatpush2.msra.mxu0 0.0
    %796 = vmatprep.subr.mxu0 0.0
    %797 = vmatpush2.msra.mxu0 0.0
    %798 = vmatprep.subr.mxu0 0.0
    %799 = vmatpush2.msra.mxu0 0.0
    %800 = vmatprep.subr.mxu0 0.0
    %801 = vmatpush2.msra.mxu0 0.0
    %802 = vmatprep.mubr.f32.mxu0 0.0
    %v803 = vand.u32 %v541, 4294901760
    %804 = vmatmul.mubr.f32.gmra.mxu0 %v803
    %v805 = vpop.f32.mrf.mxu0
    %v806 = vadd.f32 %v655, %v805
    %v807 = vpop.f32.mrf.mxu0
    %808 = vdwg.mxu0
    %809 = vmatprep.subr.mxu0 0.0
    %v810 = vand.u32 %v558, 4294901760
    %v811 = vsub.f32 %v558, %v810
    %812 = vmatpush1.msra.mxu0 %v811
    %813 = vmatprep.subr.mxu0 0.0
    %v814 = vand.u32 %v557, 4294901760
    %v815 = vsub.f32 %v557, %v814
    %816 = vmatpush1.msra.mxu0 %v815
    %817 = vmatprep.subr.mxu0 0.0
    %v818 = vand.u32 %v556, 4294901760
    %v819 = vsub.f32 %v556, %v818
    %820 = vmatpush1.msra.mxu0 %v819
    %821 = vmatprep.subr.mxu0 0.0
    %v822 = vand.u32 %v555, 4294901760
    %v823 = vsub.f32 %v555, %v822
    %824 = vmatpush1.msra.mxu0 %v823
    %825 = vmatprep.subr.mxu0 0.0
    %v826 = vand.u32 %v554, 4294901760
    %v827 = vsub.f32 %v554, %v826
    %828 = vmatpush1.msra.mxu0 %v827
    %829 = vmatprep.subr.mxu0 0.0
    %v830 = vand.u32 %v553, 4294901760
    %v831 = vsub.f32 %v553, %v830
    %832 = vmatpush1.msra.mxu0 %v831
    %833 = vmatprep.subr.mxu0 0.0
    %v834 = vand.u32 %v552, 4294901760
    %v835 = vsub.f32 %v552, %v834
    %836 = vmatpush1.msra.mxu0 %v835
    %837 = vmatprep.subr.mxu0 0.0
    %v838 = vand.u32 %v551, 4294901760
    %v839 = vsub.f32 %v551, %v838
    %840 = vmatpush1.msra.mxu0 %v839
    %841 = vmatprep.subr.mxu0 0.0
    %v842 = vand.u32 %v550, 4294901760
    %v843 = vsub.f32 %v550, %v842
    %844 = vmatpush1.msra.mxu0 %v843
    %845 = vmatprep.subr.mxu0 0.0
    %v846 = vand.u32 %v549, 4294901760
    %v847 = vsub.f32 %v549, %v846
    %848 = vmatpush1.msra.mxu0 %v847
    %849 = vmatprep.subr.mxu0 0.0
    %v850 = vand.u32 %v548, 4294901760
    %v851 = vsub.f32 %v548, %v850
    %852 = vmatpush1.msra.mxu0 %v851
    %853 = vmatprep.subr.mxu0 0.0
    %v854 = vand.u32 %v547, 4294901760
    %v855 = vsub.f32 %v547, %v854
    %856 = vmatpush1.msra.mxu0 %v855
    %857 = vmatprep.subr.mxu0 0.0
    %v858 = vand.u32 %v546, 4294901760
    %v859 = vsub.f32 %v546, %v858
    %860 = vmatpush1.msra.mxu0 %v859
    %861 = vmatprep.subr.mxu0 0.0
    %v862 = vand.u32 %v545, 4294901760
    %v863 = vsub.f32 %v545, %v862
    %864 = vmatpush1.msra.mxu0 %v863
    %865 = vmatprep.subr.mxu0 0.0
    %v866 = vand.u32 %v544, 4294901760
    %v867 = vsub.f32 %v544, %v866
    %868 = vmatpush1.msra.mxu0 %v867
    %869 = vmatprep.subr.mxu0 0.0
    %v870 = vand.u32 %v543, 4294901760
    %v871 = vsub.f32 %v543, %v870
    %872 = vmatpush1.msra.mxu0 %v871
    %873 = vmatprep.subr.mxu0 0.0
    %874 = vmatpush2.msra.mxu0 0.0
    %875 = vmatprep.subr.mxu0 0.0
    %876 = vmatpush2.msra.mxu0 0.0
    %877 = vmatprep.subr.mxu0 0.0
    %878 = vmatpush2.msra.mxu0 0.0
    %879 = vmatprep.subr.mxu0 0.0
    %880 = vmatpush2.msra.mxu0 0.0
    %881 = vmatprep.subr.mxu0 0.0
    %882 = vmatpush2.msra.mxu0 0.0
    %883 = vmatprep.subr.mxu0 0.0
    %884 = vmatpush2.msra.mxu0 0.0
    %885 = vmatprep.subr.mxu0 0.0
    %886 = vmatpush2.msra.mxu0 0.0
    %887 = vmatprep.subr.mxu0 0.0
    %888 = vmatpush2.msra.mxu0 0.0
    %889 = vmatprep.subr.mxu0 0.0
    %890 = vmatpush2.msra.mxu0 0.0
    %891 = vmatprep.subr.mxu0 0.0
    %892 = vmatpush2.msra.mxu0 0.0
    %893 = vmatprep.subr.mxu0 0.0
    %894 = vmatpush2.msra.mxu0 0.0
    %895 = vmatprep.subr.mxu0 0.0
    %896 = vmatpush2.msra.mxu0 0.0
    %897 = vmatprep.subr.mxu0 0.0
    %898 = vmatpush2.msra.mxu0 0.0
    %899 = vmatprep.subr.mxu0 0.0
    %900 = vmatpush2.msra.mxu0 0.0
    %901 = vmatprep.subr.mxu0 0.0
    %902 = vmatpush2.msra.mxu0 0.0
    %903 = vmatprep.subr.mxu0 0.0
    %904 = vmatpush2.msra.mxu0 0.0
    %905 = vmatprep.mubr.f32.mxu0 0.0
    %v906 = vand.u32 %v541, 4294901760
    %v907 = vsub.f32 %v541, %v906
    %908 = vmatmul.mubr.f32.gmra.mxu0 %v907
    %v909 = vpop.f32.mrf.mxu0
    %v910 = vadd.f32 %v806, %v909
    %v911 = vpop.f32.mrf.mxu0
    %912 = vdwg.mxu0
    %913 = vmatprep.subr.mxu0 0.0
    %v914 = vand.u32 %v558, 4294901760
    %915 = vmatpush1.msra.mxu0 %v914
    %916 = vmatprep.subr.mxu0 0.0
    %v917 = vand.u32 %v557, 4294901760
    %918 = vmatpush1.msra.mxu0 %v917
    %919 = vmatprep.subr.mxu0 0.0
    %v920 = vand.u32 %v556, 4294901760
    %921 = vmatpush1.msra.mxu0 %v920
    %922 = vmatprep.subr.mxu0 0.0
    %v923 = vand.u32 %v555, 4294901760
    %924 = vmatpush1.msra.mxu0 %v923
    %925 = vmatprep.subr.mxu0 0.0
    %v926 = vand.u32 %v554, 4294901760
    %927 = vmatpush1.msra.mxu0 %v926
    %928 = vmatprep.subr.mxu0 0.0
    %v929 = vand.u32 %v553, 4294901760
    %930 = vmatpush1.msra.mxu0 %v929
    %931 = vmatprep.subr.mxu0 0.0
    %v932 = vand.u32 %v552, 4294901760
    %933 = vmatpush1.msra.mxu0 %v932
    %934 = vmatprep.subr.mxu0 0.0
    %v935 = vand.u32 %v551, 4294901760
    %936 = vmatpush1.msra.mxu0 %v935
    %937 = vmatprep.subr.mxu0 0.0
    %v938 = vand.u32 %v550, 4294901760
    %939 = vmatpush1.msra.mxu0 %v938
    %940 = vmatprep.subr.mxu0 0.0
    %v941 = vand.u32 %v549, 4294901760
    %942 = vmatpush1.msra.mxu0 %v941
    %943 = vmatprep.subr.mxu0 0.0
    %v944 = vand.u32 %v548, 4294901760
    %945 = vmatpush1.msra.mxu0 %v944
    %946 = vmatprep.subr.mxu0 0.0
    %v947 = vand.u32 %v547, 4294901760
    %948 = vmatpush1.msra.mxu0 %v947
    %949 = vmatprep.subr.mxu0 0.0
    %v950 = vand.u32 %v546, 4294901760
    %951 = vmatpush1.msra.mxu0 %v950
    %952 = vmatprep.subr.mxu0 0.0
    %v953 = vand.u32 %v545, 4294901760
    %954 = vmatpush1.msra.mxu0 %v953
    %955 = vmatprep.subr.mxu0 0.0
    %v956 = vand.u32 %v544, 4294901760
    %957 = vmatpush1.msra.mxu0 %v956
    %958 = vmatprep.subr.mxu0 0.0
    %v959 = vand.u32 %v543, 4294901760
    %960 = vmatpush1.msra.mxu0 %v959
    %961 = vmatprep.subr.mxu0 0.0
    %962 = vmatpush2.msra.mxu0 0.0
    %963 = vmatprep.subr.mxu0 0.0
    %964 = vmatpush2.msra.mxu0 0.0
    %965 = vmatprep.subr.mxu0 0.0
    %966 = vmatpush2.msra.mxu0 0.0
    %967 = vmatprep.subr.mxu0 0.0
    %968 = vmatpush2.msra.mxu0 0.0
    %969 = vmatprep.subr.mxu0 0.0
    %970 = vmatpush2.msra.mxu0 0.0
    %971 = vmatprep.subr.mxu0 0.0
    %972 = vmatpush2.msra.mxu0 0.0
    %973 = vmatprep.subr.mxu0 0.0
    %974 = vmatpush2.msra.mxu0 0.0
    %975 = vmatprep.subr.mxu0 0.0
    %976 = vmatpush2.msra.mxu0 0.0
    %977 = vmatprep.subr.mxu0 0.0
    %978 = vmatpush2.msra.mxu0 0.0
    %979 = vmatprep.subr.mxu0 0.0
    %980 = vmatpush2.msra.mxu0 0.0
    %981 = vmatprep.subr.mxu0 0.0
    %982 = vmatpush2.msra.mxu0 0.0
    %983 = vmatprep.subr.mxu0 0.0
    %984 = vmatpush2.msra.mxu0 0.0
    %985 = vmatprep.subr.mxu0 0.0
    %986 = vmatpush2.msra.mxu0 0.0
    %987 = vmatprep.subr.mxu0 0.0
    %988 = vmatpush2.msra.mxu0 0.0
    %989 = vmatprep.subr.mxu0 0.0
    %990 = vmatpush2.msra.mxu0 0.0
    %991 = vmatprep.subr.mxu0 0.0
    %992 = vmatpush2.msra.mxu0 0.0
    %993 = vmatprep.mubr.f32.mxu0 0.0
    %v994 = vand.u32 %v541, 4294901760
    %v995 = vsub.f32 %v541, %v994
    %v996 = vand.u32 %v995, 4294901760
    %997 = vmatmul.mubr.f32.gmra.mxu0 %v996
    %v998 = vpop.f32.mrf.mxu0
    %v999 = vadd.f32 %v910, %v998
    %v1000 = vpop.f32.mrf.mxu0
    %1001 = vdwg.mxu0
    %1002 = vmatprep.subr.mxu0 0.0
    %v1003 = vand.u32 %v558, 4294901760
    %v1004 = vsub.f32 %v558, %v1003
    %v1005 = vand.u32 %v1004, 4294901760
    %1006 = vmatpush1.msra.mxu0 %v1005
    %1007 = vmatprep.subr.mxu0 0.0
    %v1008 = vand.u32 %v557, 4294901760
    %v1009 = vsub.f32 %v557, %v1008
    %v1010 = vand.u32 %v1009, 4294901760
    %1011 = vmatpush1.msra.mxu0 %v1010
    %1012 = vmatprep.subr.mxu0 0.0
    %v1013 = vand.u32 %v556, 4294901760
    %v1014 = vsub.f32 %v556, %v1013
    %v1015 = vand.u32 %v1014, 4294901760
    %1016 = vmatpush1.msra.mxu0 %v1015
    %1017 = vmatprep.subr.mxu0 0.0
    %v1018 = vand.u32 %v555, 4294901760
    %v1019 = vsub.f32 %v555, %v1018
    %v1020 = vand.u32 %v1019, 4294901760
    %1021 = vmatpush1.msra.mxu0 %v1020
    %1022 = vmatprep.subr.mxu0 0.0
    %v1023 = vand.u32 %v554, 4294901760
    %v1024 = vsub.f32 %v554, %v1023
    %v1025 = vand.u32 %v1024, 4294901760
    %1026 = vmatpush1.msra.mxu0 %v1025
    %1027 = vmatprep.subr.mxu0 0.0
    %v1028 = vand.u32 %v553, 4294901760
    %v1029 = vsub.f32 %v553, %v1028
    %v1030 = vand.u32 %v1029, 4294901760
    %1031 = vmatpush1.msra.mxu0 %v1030
    %1032 = vmatprep.subr.mxu0 0.0
    %v1033 = vand.u32 %v552, 4294901760
    %v1034 = vsub.f32 %v552, %v1033
    %v1035 = vand.u32 %v1034, 4294901760
    %1036 = vmatpush1.msra.mxu0 %v1035
    %1037 = vmatprep.subr.mxu0 0.0
    %v1038 = vand.u32 %v551, 4294901760
    %v1039 = vsub.f32 %v551, %v1038
    %v1040 = vand.u32 %v1039, 4294901760
    %1041 = vmatpush1.msra.mxu0 %v1040
    %1042 = vmatprep.subr.mxu0 0.0
    %v1043 = vand.u32 %v550, 4294901760
    %v1044 = vsub.f32 %v550, %v1043
    %v1045 = vand.u32 %v1044, 4294901760
    %1046 = vmatpush1.msra.mxu0 %v1045
    %1047 = vmatprep.subr.mxu0 0.0
    %v1048 = vand.u32 %v549, 4294901760
    %v1049 = vsub.f32 %v549, %v1048
    %v1050 = vand.u32 %v1049, 4294901760
    %1051 = vmatpush1.msra.mxu0 %v1050
    %1052 = vmatprep.subr.mxu0 0.0
    %v1053 = vand.u32 %v548, 4294901760
    %v1054 = vsub.f32 %v548, %v1053
    %v1055 = vand.u32 %v1054, 4294901760
    %1056 = vmatpush1.msra.mxu0 %v1055
    %1057 = vmatprep.subr.mxu0 0.0
    %v1058 = vand.u32 %v547, 4294901760
    %v1059 = vsub.f32 %v547, %v1058
    %v1060 = vand.u32 %v1059, 4294901760
    %1061 = vmatpush1.msra.mxu0 %v1060
    %1062 = vmatprep.subr.mxu0 0.0
    %v1063 = vand.u32 %v546, 4294901760
    %v1064 = vsub.f32 %v546, %v1063
    %v1065 = vand.u32 %v1064, 4294901760
    %1066 = vmatpush1.msra.mxu0 %v1065
    %1067 = vmatprep.subr.mxu0 0.0
    %v1068 = vand.u32 %v545, 4294901760
    %v1069 = vsub.f32 %v545, %v1068
    %v1070 = vand.u32 %v1069, 4294901760
    %1071 = vmatpush1.msra.mxu0 %v1070
    %1072 = vmatprep.subr.mxu0 0.0
    %v1073 = vand.u32 %v544, 4294901760
    %v1074 = vsub.f32 %v544, %v1073
    %v1075 = vand.u32 %v1074, 4294901760
    %1076 = vmatpush1.msra.mxu0 %v1075
    %1077 = vmatprep.subr.mxu0 0.0
    %v1078 = vand.u32 %v543, 4294901760
    %v1079 = vsub.f32 %v543, %v1078
    %v1080 = vand.u32 %v1079, 4294901760
    %1081 = vmatpush1.msra.mxu0 %v1080
    %1082 = vmatprep.subr.mxu0 0.0
    %1083 = vmatpush2.msra.mxu0 0.0
    %1084 = vmatprep.subr.mxu0 0.0
    %1085 = vmatpush2.msra.mxu0 0.0
    %1086 = vmatprep.subr.mxu0 0.0
    %1087 = vmatpush2.msra.mxu0 0.0
    %1088 = vmatprep.subr.mxu0 0.0
    %1089 = vmatpush2.msra.mxu0 0.0
    %1090 = vmatprep.subr.mxu0 0.0
    %1091 = vmatpush2.msra.mxu0 0.0
    %1092 = vmatprep.subr.mxu0 0.0
    %1093 = vmatpush2.msra.mxu0 0.0
    %1094 = vmatprep.subr.mxu0 0.0
    %1095 = vmatpush2.msra.mxu0 0.0
    %1096 = vmatprep.subr.mxu0 0.0
    %1097 = vmatpush2.msra.mxu0 0.0
    %1098 = vmatprep.subr.mxu0 0.0
    %1099 = vmatpush2.msra.mxu0 0.0
    %1100 = vmatprep.subr.mxu0 0.0
    %1101 = vmatpush2.msra.mxu0 0.0
    %1102 = vmatprep.subr.mxu0 0.0
    %1103 = vmatpush2.msra.mxu0 0.0
    %1104 = vmatprep.subr.mxu0 0.0
    %1105 = vmatpush2.msra.mxu0 0.0
    %1106 = vmatprep.subr.mxu0 0.0
    %1107 = vmatpush2.msra.mxu0 0.0
    %1108 = vmatprep.subr.mxu0 0.0
    %1109 = vmatpush2.msra.mxu0 0.0
    %1110 = vmatprep.subr.mxu0 0.0
    %1111 = vmatpush2.msra.mxu0 0.0
    %1112 = vmatprep.subr.mxu0 0.0
    %1113 = vmatpush2.msra.mxu0 0.0
    %1114 = vmatprep.mubr.f32.mxu0 0.0
    %v1115 = vand.u32 %v541, 4294901760
    %1116 = vmatmul.mubr.f32.gmra.mxu0 %v1115
    %v1117 = vpop.f32.mrf.mxu0
    %v1118 = vadd.f32 %v999, %v1117
    %v1119 = vpop.f32.mrf.mxu0
    %1120 = vdwg.mxu0
    %1121 = vmatprep.subr.mxu0 0.0
    %v1122 = vand.u32 %v558, 4294901760
    %1123 = vmatpush1.msra.mxu0 %v1122
    %1124 = vmatprep.subr.mxu0 0.0
    %v1125 = vand.u32 %v557, 4294901760
    %1126 = vmatpush1.msra.mxu0 %v1125
    %1127 = vmatprep.subr.mxu0 0.0
    %v1128 = vand.u32 %v556, 4294901760
    %1129 = vmatpush1.msra.mxu0 %v1128
    %1130 = vmatprep.subr.mxu0 0.0
    %v1131 = vand.u32 %v555, 4294901760
    %1132 = vmatpush1.msra.mxu0 %v1131
    %1133 = vmatprep.subr.mxu0 0.0
    %v1134 = vand.u32 %v554, 4294901760
    %1135 = vmatpush1.msra.mxu0 %v1134
    %1136 = vmatprep.subr.mxu0 0.0
    %v1137 = vand.u32 %v553, 4294901760
    %1138 = vmatpush1.msra.mxu0 %v1137
    %1139 = vmatprep.subr.mxu0 0.0
    %v1140 = vand.u32 %v552, 4294901760
    %1141 = vmatpush1.msra.mxu0 %v1140
    %1142 = vmatprep.subr.mxu0 0.0
    %v1143 = vand.u32 %v551, 4294901760
    %1144 = vmatpush1.msra.mxu0 %v1143
    %1145 = vmatprep.subr.mxu0 0.0
    %v1146 = vand.u32 %v550, 4294901760
    %1147 = vmatpush1.msra.mxu0 %v1146
    %1148 = vmatprep.subr.mxu0 0.0
    %v1149 = vand.u32 %v549, 4294901760
    %1150 = vmatpush1.msra.mxu0 %v1149
    %1151 = vmatprep.subr.mxu0 0.0
    %v1152 = vand.u32 %v548, 4294901760
    %1153 = vmatpush1.msra.mxu0 %v1152
    %1154 = vmatprep.subr.mxu0 0.0
    %v1155 = vand.u32 %v547, 4294901760
    %1156 = vmatpush1.msra.mxu0 %v1155
    %1157 = vmatprep.subr.mxu0 0.0
    %v1158 = vand.u32 %v546, 4294901760
    %1159 = vmatpush1.msra.mxu0 %v1158
    %1160 = vmatprep.subr.mxu0 0.0
    %v1161 = vand.u32 %v545, 4294901760
    %1162 = vmatpush1.msra.mxu0 %v1161
    %1163 = vmatprep.subr.mxu0 0.0
    %v1164 = vand.u32 %v544, 4294901760
    %1165 = vmatpush1.msra.mxu0 %v1164
    %1166 = vmatprep.subr.mxu0 0.0
    %v1167 = vand.u32 %v543, 4294901760
    %1168 = vmatpush1.msra.mxu0 %v1167
    %1169 = vmatprep.subr.mxu0 0.0
    %1170 = vmatpush2.msra.mxu0 0.0
    %1171 = vmatprep.subr.mxu0 0.0
    %1172 = vmatpush2.msra.mxu0 0.0
    %1173 = vmatprep.subr.mxu0 0.0
    %1174 = vmatpush2.msra.mxu0 0.0
    %1175 = vmatprep.subr.mxu0 0.0
    %1176 = vmatpush2.msra.mxu0 0.0
    %1177 = vmatprep.subr.mxu0 0.0
    %1178 = vmatpush2.msra.mxu0 0.0
    %1179 = vmatprep.subr.mxu0 0.0
    %1180 = vmatpush2.msra.mxu0 0.0
    %1181 = vmatprep.subr.mxu0 0.0
    %1182 = vmatpush2.msra.mxu0 0.0
    %1183 = vmatprep.subr.mxu0 0.0
    %1184 = vmatpush2.msra.mxu0 0.0
    %1185 = vmatprep.subr.mxu0 0.0
    %1186 = vmatpush2.msra.mxu0 0.0
    %1187 = vmatprep.subr.mxu0 0.0
    %1188 = vmatpush2.msra.mxu0 0.0
    %1189 = vmatprep.subr.mxu0 0.0
    %1190 = vmatpush2.msra.mxu0 0.0
    %1191 = vmatprep.subr.mxu0 0.0
    %1192 = vmatpush2.msra.mxu0 0.0
    %1193 = vmatprep.subr.mxu0 0.0
    %1194 = vmatpush2.msra.mxu0 0.0
    %1195 = vmatprep.subr.mxu0 0.0
    %1196 = vmatpush2.msra.mxu0 0.0
    %1197 = vmatprep.subr.mxu0 0.0
    %1198 = vmatpush2.msra.mxu0 0.0
    %1199 = vmatprep.subr.mxu0 0.0
    %1200 = vmatpush2.msra.mxu0 0.0
    %1201 = vmatprep.mubr.f32.mxu0 0.0
    %v1202 = vand.u32 %v541, 4294901760
    %1203 = vmatmul.mubr.f32.gmra.mxu0 %v1202
    %v1204 = vpop.f32.mrf.mxu0
    %v1205 = vadd.f32 %v1118, %v1204
    %v1206 = vpop.f32.mrf.mxu0
    %1207 = vdwg.mxu0
    %v1208 = vmax.f32 %v1205, 0.0
    %s1209 = scalar_lea.vmem [#allocation4], 256
    %v1210 = vld [vmem:[%s1209] sm:$0xff]
    %v1211 = vld [vmem:[%s1209 + $0x8] sm:$0xff]
    %v1212 = vld [vmem:[%s1209 + $0x10] sm:$0xff]
    %v1213 = vld [vmem:[%s1209 + $0x18] sm:$0xff]
    %v1214 = vld [vmem:[%s1209 + $0x20] sm:$0xff]
    %v1215 = vld [vmem:[%s1209 + $0x28] sm:$0xff]
    %v1216 = vld [vmem:[%s1209 + $0x30] sm:$0xff]
    %v1217 = vld [vmem:[%s1209 + $0x38] sm:$0xff]
    %v1218 = vld [vmem:[%s1209 + $0x40] sm:$0xff]
    %v1219 = vld [vmem:[%s1209 + $0x48] sm:$0xff]
    %v1220 = vld [vmem:[%s1209 + $0x50] sm:$0xff]
    %v1221 = vld [vmem:[%s1209 + $0x58] sm:$0xff]
    %v1222 = vld [vmem:[%s1209 + $0x60] sm:$0xff]
    %v1223 = vld [vmem:[%s1209 + $0x68] sm:$0xff]
    %v1224 = vld [vmem:[%s1209 + $0x70] sm:$0xff]
    %v1225 = vld [vmem:[%s1209 + $0x78] sm:$0xff]
    %s1226 = scalar_lea.vmem %s2, 2
    %v1227 = vld [vmem:[%s1226] sm:$0x1]
    %v1229 = vlaneseq
    %v1230 = vshrl.u32 %v1229, 7
    %v1231 = vsub.s32 0, %v1230
    %v1232 = vrot.slane %v1227, %v1231
    %1234 = vmatprep.subr.mxu0 0.0
    %v1235 = vand.u32 %v1225, 4294901760
    %1236 = vmatpush1.msra.mxu0 %v1235
    %1237 = vmatprep.subr.mxu0 0.0
    %v1238 = vand.u32 %v1224, 4294901760
    %1239 = vmatpush1.msra.mxu0 %v1238
    %1240 = vmatprep.subr.mxu0 0.0
    %v1241 = vand.u32 %v1223, 4294901760
    %1242 = vmatpush1.msra.mxu0 %v1241
    %1243 = vmatprep.subr.mxu0 0.0
    %v1244 = vand.u32 %v1222, 4294901760
    %1245 = vmatpush1.msra.mxu0 %v1244
    %1246 = vmatprep.subr.mxu0 0.0
    %v1247 = vand.u32 %v1221, 4294901760
    %1248 = vmatpush1.msra.mxu0 %v1247
    %1249 = vmatprep.subr.mxu0 0.0
    %v1250 = vand.u32 %v1220, 4294901760
    %1251 = vmatpush1.msra.mxu0 %v1250
    %1252 = vmatprep.subr.mxu0 0.0
    %v1253 = vand.u32 %v1219, 4294901760
    %1254 = vmatpush1.msra.mxu0 %v1253
    %1255 = vmatprep.subr.mxu0 0.0
    %v1256 = vand.u32 %v1218, 4294901760
    %1257 = vmatpush1.msra.mxu0 %v1256
    %1258 = vmatprep.subr.mxu0 0.0
    %v1259 = vand.u32 %v1217, 4294901760
    %1260 = vmatpush1.msra.mxu0 %v1259
    %1261 = vmatprep.subr.mxu0 0.0
    %v1262 = vand.u32 %v1216, 4294901760
    %1263 = vmatpush1.msra.mxu0 %v1262
    %1264 = vmatprep.subr.mxu0 0.0
    %v1265 = vand.u32 %v1215, 4294901760
    %1266 = vmatpush1.msra.mxu0 %v1265
    %1267 = vmatprep.subr.mxu0 0.0
    %v1268 = vand.u32 %v1214, 4294901760
    %1269 = vmatpush1.msra.mxu0 %v1268
    %1270 = vmatprep.subr.mxu0 0.0
    %v1271 = vand.u32 %v1213, 4294901760
    %1272 = vmatpush1.msra.mxu0 %v1271
    %1273 = vmatprep.subr.mxu0 0.0
    %v1274 = vand.u32 %v1212, 4294901760
    %1275 = vmatpush1.msra.mxu0 %v1274
    %1276 = vmatprep.subr.mxu0 0.0
    %v1277 = vand.u32 %v1211, 4294901760
    %1278 = vmatpush1.msra.mxu0 %v1277
    %1279 = vmatprep.subr.mxu0 0.0
    %v1280 = vand.u32 %v1210, 4294901760
    %1281 = vmatpush1.msra.mxu0 %v1280
    %1282 = vmatprep.subr.mxu0 0.0
    %1283 = vmatpush2.msra.mxu0 0.0
    %1284 = vmatprep.subr.mxu0 0.0
    %1285 = vmatpush2.msra.mxu0 0.0
    %1286 = vmatprep.subr.mxu0 0.0
    %1287 = vmatpush2.msra.mxu0 0.0
    %1288 = vmatprep.subr.mxu0 0.0
    %1289 = vmatpush2.msra.mxu0 0.0
    %1290 = vmatprep.subr.mxu0 0.0
    %1291 = vmatpush2.msra.mxu0 0.0
    %1292 = vmatprep.subr.mxu0 0.0
    %1293 = vmatpush2.msra.mxu0 0.0
    %1294 = vmatprep.subr.mxu0 0.0
    %1295 = vmatpush2.msra.mxu0 0.0
    %1296 = vmatprep.subr.mxu0 0.0
    %1297 = vmatpush2.msra.mxu0 0.0
    %1298 = vmatprep.subr.mxu0 0.0
    %1299 = vmatpush2.msra.mxu0 0.0
    %1300 = vmatprep.subr.mxu0 0.0
    %1301 = vmatpush2.msra.mxu0 0.0
    %1302 = vmatprep.subr.mxu0 0.0
    %1303 = vmatpush2.msra.mxu0 0.0
    %1304 = vmatprep.subr.mxu0 0.0
    %1305 = vmatpush2.msra.mxu0 0.0
    %1306 = vmatprep.subr.mxu0 0.0
    %1307 = vmatpush2.msra.mxu0 0.0
    %1308 = vmatprep.subr.mxu0 0.0
    %1309 = vmatpush2.msra.mxu0 0.0
    %1310 = vmatprep.subr.mxu0 0.0
    %1311 = vmatpush2.msra.mxu0 0.0
    %1312 = vmatprep.subr.mxu0 0.0
    %1313 = vmatpush2.msra.mxu0 0.0
    %1314 = vmatprep.mubr.f32.mxu0 0.0
    %v1315 = vand.u32 %v1208, 4294901760
    %v1316 = vsub.f32 %v1208, %v1315
    %v1317 = vand.u32 %v1316, 4294901760
    %v1318 = vsub.f32 %v1316, %v1317
    %v1319 = vand.u32 %v1318, 4294901760
    %1320 = vmatmul.mubr.f32.gmra.mxu0 %v1319
    %v1321 = vpop.f32.mrf.mxu0
    %v1322 = vadd.f32 %v1232, %v1321
    %v1323 = vpop.f32.mrf.mxu0
    %1324 = vdwg.mxu0
    %1325 = vmatprep.subr.mxu0 0.0
    %v1326 = vand.u32 %v1225, 4294901760
    %v1327 = vsub.f32 %v1225, %v1326
    %v1328 = vand.u32 %v1327, 4294901760
    %v1329 = vsub.f32 %v1327, %v1328
    %v1330 = vand.u32 %v1329, 4294901760
    %1331 = vmatpush1.msra.mxu0 %v1330
    %1332 = vmatprep.subr.mxu0 0.0
    %v1333 = vand.u32 %v1224, 4294901760
    %v1334 = vsub.f32 %v1224, %v1333
    %v1335 = vand.u32 %v1334, 4294901760
    %v1336 = vsub.f32 %v1334, %v1335
    %v1337 = vand.u32 %v1336, 4294901760
    %1338 = vmatpush1.msra.mxu0 %v1337
    %1339 = vmatprep.subr.mxu0 0.0
    %v1340 = vand.u32 %v1223, 4294901760
    %v1341 = vsub.f32 %v1223, %v1340
    %v1342 = vand.u32 %v1341, 4294901760
    %v1343 = vsub.f32 %v1341, %v1342
    %v1344 = vand.u32 %v1343, 4294901760
    %1345 = vmatpush1.msra.mxu0 %v1344
    %1346 = vmatprep.subr.mxu0 0.0
    %v1347 = vand.u32 %v1222, 4294901760
    %v1348 = vsub.f32 %v1222, %v1347
    %v1349 = vand.u32 %v1348, 4294901760
    %v1350 = vsub.f32 %v1348, %v1349
    %v1351 = vand.u32 %v1350, 4294901760
    %1352 = vmatpush1.msra.mxu0 %v1351
    %1353 = vmatprep.subr.mxu0 0.0
    %v1354 = vand.u32 %v1221, 4294901760
    %v1355 = vsub.f32 %v1221, %v1354
    %v1356 = vand.u32 %v1355, 4294901760
    %v1357 = vsub.f32 %v1355, %v1356
    %v1358 = vand.u32 %v1357, 4294901760
    %1359 = vmatpush1.msra.mxu0 %v1358
    %1360 = vmatprep.subr.mxu0 0.0
    %v1361 = vand.u32 %v1220, 4294901760
    %v1362 = vsub.f32 %v1220, %v1361
    %v1363 = vand.u32 %v1362, 4294901760
    %v1364 = vsub.f32 %v1362, %v1363
    %v1365 = vand.u32 %v1364, 4294901760
    %1366 = vmatpush1.msra.mxu0 %v1365
    %1367 = vmatprep.subr.mxu0 0.0
    %v1368 = vand.u32 %v1219, 4294901760
    %v1369 = vsub.f32 %v1219, %v1368
    %v1370 = vand.u32 %v1369, 4294901760
    %v1371 = vsub.f32 %v1369, %v1370
    %v1372 = vand.u32 %v1371, 4294901760
    %1373 = vmatpush1.msra.mxu0 %v1372
    %1374 = vmatprep.subr.mxu0 0.0
    %v1375 = vand.u32 %v1218, 4294901760
    %v1376 = vsub.f32 %v1218, %v1375
    %v1377 = vand.u32 %v1376, 4294901760
    %v1378 = vsub.f32 %v1376, %v1377
    %v1379 = vand.u32 %v1378, 4294901760
    %1380 = vmatpush1.msra.mxu0 %v1379
    %1381 = vmatprep.subr.mxu0 0.0
    %v1382 = vand.u32 %v1217, 4294901760
    %v1383 = vsub.f32 %v1217, %v1382
    %v1384 = vand.u32 %v1383, 4294901760
    %v1385 = vsub.f32 %v1383, %v1384
    %v1386 = vand.u32 %v1385, 4294901760
    %1387 = vmatpush1.msra.mxu0 %v1386
    %1388 = vmatprep.subr.mxu0 0.0
    %v1389 = vand.u32 %v1216, 4294901760
    %v1390 = vsub.f32 %v1216, %v1389
    %v1391 = vand.u32 %v1390, 4294901760
    %v1392 = vsub.f32 %v1390, %v1391
    %v1393 = vand.u32 %v1392, 4294901760
    %1394 = vmatpush1.msra.mxu0 %v1393
    %1395 = vmatprep.subr.mxu0 0.0
    %v1396 = vand.u32 %v1215, 4294901760
    %v1397 = vsub.f32 %v1215, %v1396
    %v1398 = vand.u32 %v1397, 4294901760
    %v1399 = vsub.f32 %v1397, %v1398
    %v1400 = vand.u32 %v1399, 4294901760
    %1401 = vmatpush1.msra.mxu0 %v1400
    %1402 = vmatprep.subr.mxu0 0.0
    %v1403 = vand.u32 %v1214, 4294901760
    %v1404 = vsub.f32 %v1214, %v1403
    %v1405 = vand.u32 %v1404, 4294901760
    %v1406 = vsub.f32 %v1404, %v1405
    %v1407 = vand.u32 %v1406, 4294901760
    %1408 = vmatpush1.msra.mxu0 %v1407
    %1409 = vmatprep.subr.mxu0 0.0
    %v1410 = vand.u32 %v1213, 4294901760
    %v1411 = vsub.f32 %v1213, %v1410
    %v1412 = vand.u32 %v1411, 4294901760
    %v1413 = vsub.f32 %v1411, %v1412
    %v1414 = vand.u32 %v1413, 4294901760
    %1415 = vmatpush1.msra.mxu0 %v1414
    %1416 = vmatprep.subr.mxu0 0.0
    %v1417 = vand.u32 %v1212, 4294901760
    %v1418 = vsub.f32 %v1212, %v1417
    %v1419 = vand.u32 %v1418, 4294901760
    %v1420 = vsub.f32 %v1418, %v1419
    %v1421 = vand.u32 %v1420, 4294901760
    %1422 = vmatpush1.msra.mxu0 %v1421
    %1423 = vmatprep.subr.mxu0 0.0
    %v1424 = vand.u32 %v1211, 4294901760
    %v1425 = vsub.f32 %v1211, %v1424
    %v1426 = vand.u32 %v1425, 4294901760
    %v1427 = vsub.f32 %v1425, %v1426
    %v1428 = vand.u32 %v1427, 4294901760
    %1429 = vmatpush1.msra.mxu0 %v1428
    %1430 = vmatprep.subr.mxu0 0.0
    %v1431 = vand.u32 %v1210, 4294901760
    %v1432 = vsub.f32 %v1210, %v1431
    %v1433 = vand.u32 %v1432, 4294901760
    %v1434 = vsub.f32 %v1432, %v1433
    %v1435 = vand.u32 %v1434, 4294901760
    %1436 = vmatpush1.msra.mxu0 %v1435
    %1437 = vmatprep.subr.mxu0 0.0
    %1438 = vmatpush2.msra.mxu0 0.0
    %1439 = vmatprep.subr.mxu0 0.0
    %1440 = vmatpush2.msra.mxu0 0.0
    %1441 = vmatprep.subr.mxu0 0.0
    %1442 = vmatpush2.msra.mxu0 0.0
    %1443 = vmatprep.subr.mxu0 0.0
    %1444 = vmatpush2.msra.mxu0 0.0
    %1445 = vmatprep.subr.mxu0 0.0
    %1446 = vmatpush2.msra.mxu0 0.0
    %1447 = vmatprep.subr.mxu0 0.0
    %1448 = vmatpush2.msra.mxu0 0.0
    %1449 = vmatprep.subr.mxu0 0.0
    %1450 = vmatpush2.msra.mxu0 0.0
    %1451 = vmatprep.subr.mxu0 0.0
    %1452 = vmatpush2.msra.mxu0 0.0
    %1453 = vmatprep.subr.mxu0 0.0
    %1454 = vmatpush2.msra.mxu0 0.0
    %1455 = vmatprep.subr.mxu0 0.0
    %1456 = vmatpush2.msra.mxu0 0.0
    %1457 = vmatprep.subr.mxu0 0.0
    %1458 = vmatpush2.msra.mxu0 0.0
    %1459 = vmatprep.subr.mxu0 0.0
    %1460 = vmatpush2.msra.mxu0 0.0
    %1461 = vmatprep.subr.mxu0 0.0
    %1462 = vmatpush2.msra.mxu0 0.0
    %1463 = vmatprep.subr.mxu0 0.0
    %1464 = vmatpush2.msra.mxu0 0.0
    %1465 = vmatprep.subr.mxu0 0.0
    %1466 = vmatpush2.msra.mxu0 0.0
    %1467 = vmatprep.subr.mxu0 0.0
    %1468 = vmatpush2.msra.mxu0 0.0
    %1469 = vmatprep.mubr.f32.mxu0 0.0
    %v1470 = vand.u32 %v1208, 4294901760
    %1471 = vmatmul.mubr.f32.gmra.mxu0 %v1470
    %v1472 = vpop.f32.mrf.mxu0
    %v1473 = vadd.f32 %v1322, %v1472
    %v1474 = vpop.f32.mrf.mxu0
    %1475 = vdwg.mxu0
    %1476 = vmatprep.subr.mxu0 0.0
    %v1477 = vand.u32 %v1225, 4294901760
    %v1478 = vsub.f32 %v1225, %v1477
    %1479 = vmatpush1.msra.mxu0 %v1478
    %1480 = vmatprep.subr.mxu0 0.0
    %v1481 = vand.u32 %v1224, 4294901760
    %v1482 = vsub.f32 %v1224, %v1481
    %1483 = vmatpush1.msra.mxu0 %v1482
    %1484 = vmatprep.subr.mxu0 0.0
    %v1485 = vand.u32 %v1223, 4294901760
    %v1486 = vsub.f32 %v1223, %v1485
    %1487 = vmatpush1.msra.mxu0 %v1486
    %1488 = vmatprep.subr.mxu0 0.0
    %v1489 = vand.u32 %v1222, 4294901760
    %v1490 = vsub.f32 %v1222, %v1489
    %1491 = vmatpush1.msra.mxu0 %v1490
    %1492 = vmatprep.subr.mxu0 0.0
    %v1493 = vand.u32 %v1221, 4294901760
    %v1494 = vsub.f32 %v1221, %v1493
    %1495 = vmatpush1.msra.mxu0 %v1494
    %1496 = vmatprep.subr.mxu0 0.0
    %v1497 = vand.u32 %v1220, 4294901760
    %v1498 = vsub.f32 %v1220, %v1497
    %1499 = vmatpush1.msra.mxu0 %v1498
    %1500 = vmatprep.subr.mxu0 0.0
    %v1501 = vand.u32 %v1219, 4294901760
    %v1502 = vsub.f32 %v1219, %v1501
    %1503 = vmatpush1.msra.mxu0 %v1502
    %1504 = vmatprep.subr.mxu0 0.0
    %v1505 = vand.u32 %v1218, 4294901760
    %v1506 = vsub.f32 %v1218, %v1505
    %1507 = vmatpush1.msra.mxu0 %v1506
    %1508 = vmatprep.subr.mxu0 0.0
    %v1509 = vand.u32 %v1217, 4294901760
    %v1510 = vsub.f32 %v1217, %v1509
    %1511 = vmatpush1.msra.mxu0 %v1510
    %1512 = vmatprep.subr.mxu0 0.0
    %v1513 = vand.u32 %v1216, 4294901760
    %v1514 = vsub.f32 %v1216, %v1513
    %1515 = vmatpush1.msra.mxu0 %v1514
    %1516 = vmatprep.subr.mxu0 0.0
    %v1517 = vand.u32 %v1215, 4294901760
    %v1518 = vsub.f32 %v1215, %v1517
    %1519 = vmatpush1.msra.mxu0 %v1518
    %1520 = vmatprep.subr.mxu0 0.0
    %v1521 = vand.u32 %v1214, 4294901760
    %v1522 = vsub.f32 %v1214, %v1521
    %1523 = vmatpush1.msra.mxu0 %v1522
    %1524 = vmatprep.subr.mxu0 0.0
    %v1525 = vand.u32 %v1213, 4294901760
    %v1526 = vsub.f32 %v1213, %v1525
    %1527 = vmatpush1.msra.mxu0 %v1526
    %1528 = vmatprep.subr.mxu0 0.0
    %v1529 = vand.u32 %v1212, 4294901760
    %v1530 = vsub.f32 %v1212, %v1529
    %1531 = vmatpush1.msra.mxu0 %v1530
    %1532 = vmatprep.subr.mxu0 0.0
    %v1533 = vand.u32 %v1211, 4294901760
    %v1534 = vsub.f32 %v1211, %v1533
    %1535 = vmatpush1.msra.mxu0 %v1534
    %1536 = vmatprep.subr.mxu0 0.0
    %v1537 = vand.u32 %v1210, 4294901760
    %v1538 = vsub.f32 %v1210, %v1537
    %1539 = vmatpush1.msra.mxu0 %v1538
    %1540 = vmatprep.subr.mxu0 0.0
    %1541 = vmatpush2.msra.mxu0 0.0
    %1542 = vmatprep.subr.mxu0 0.0
    %1543 = vmatpush2.msra.mxu0 0.0
    %1544 = vmatprep.subr.mxu0 0.0
    %1545 = vmatpush2.msra.mxu0 0.0
    %1546 = vmatprep.subr.mxu0 0.0
    %1547 = vmatpush2.msra.mxu0 0.0
    %1548 = vmatprep.subr.mxu0 0.0
    %1549 = vmatpush2.msra.mxu0 0.0
    %1550 = vmatprep.subr.mxu0 0.0
    %1551 = vmatpush2.msra.mxu0 0.0
    %1552 = vmatprep.subr.mxu0 0.0
    %1553 = vmatpush2.msra.mxu0 0.0
    %1554 = vmatprep.subr.mxu0 0.0
    %1555 = vmatpush2.msra.mxu0 0.0
    %1556 = vmatprep.subr.mxu0 0.0
    %1557 = vmatpush2.msra.mxu0 0.0
    %1558 = vmatprep.subr.mxu0 0.0
    %1559 = vmatpush2.msra.mxu0 0.0
    %1560 = vmatprep.subr.mxu0 0.0
    %1561 = vmatpush2.msra.mxu0 0.0
    %1562 = vmatprep.subr.mxu0 0.0
    %1563 = vmatpush2.msra.mxu0 0.0
    %1564 = vmatprep.subr.mxu0 0.0
    %1565 = vmatpush2.msra.mxu0 0.0
    %1566 = vmatprep.subr.mxu0 0.0
    %1567 = vmatpush2.msra.mxu0 0.0
    %1568 = vmatprep.subr.mxu0 0.0
    %1569 = vmatpush2.msra.mxu0 0.0
    %1570 = vmatprep.subr.mxu0 0.0
    %1571 = vmatpush2.msra.mxu0 0.0
    %1572 = vmatprep.mubr.f32.mxu0 0.0
    %v1573 = vand.u32 %v1208, 4294901760
    %v1574 = vsub.f32 %v1208, %v1573
    %1575 = vmatmul.mubr.f32.gmra.mxu0 %v1574
    %v1576 = vpop.f32.mrf.mxu0
    %v1577 = vadd.f32 %v1473, %v1576
    %v1578 = vpop.f32.mrf.mxu0
    %1579 = vdwg.mxu0
    %1580 = vmatprep.subr.mxu0 0.0
    %v1581 = vand.u32 %v1225, 4294901760
    %1582 = vmatpush1.msra.mxu0 %v1581
    %1583 = vmatprep.subr.mxu0 0.0
    %v1584 = vand.u32 %v1224, 4294901760
    %1585 = vmatpush1.msra.mxu0 %v1584
    %1586 = vmatprep.subr.mxu0 0.0
    %v1587 = vand.u32 %v1223, 4294901760
    %1588 = vmatpush1.msra.mxu0 %v1587
    %1589 = vmatprep.subr.mxu0 0.0
    %v1590 = vand.u32 %v1222, 4294901760
    %1591 = vmatpush1.msra.mxu0 %v1590
    %1592 = vmatprep.subr.mxu0 0.0
    %v1593 = vand.u32 %v1221, 4294901760
    %1594 = vmatpush1.msra.mxu0 %v1593
    %1595 = vmatprep.subr.mxu0 0.0
    %v1596 = vand.u32 %v1220, 4294901760
    %1597 = vmatpush1.msra.mxu0 %v1596
    %1598 = vmatprep.subr.mxu0 0.0
    %v1599 = vand.u32 %v1219, 4294901760
    %1600 = vmatpush1.msra.mxu0 %v1599
    %1601 = vmatprep.subr.mxu0 0.0
    %v1602 = vand.u32 %v1218, 4294901760
    %1603 = vmatpush1.msra.mxu0 %v1602
    %1604 = vmatprep.subr.mxu0 0.0
    %v1605 = vand.u32 %v1217, 4294901760
    %1606 = vmatpush1.msra.mxu0 %v1605
    %1607 = vmatprep.subr.mxu0 0.0
    %v1608 = vand.u32 %v1216, 4294901760
    %1609 = vmatpush1.msra.mxu0 %v1608
    %1610 = vmatprep.subr.mxu0 0.0
    %v1611 = vand.u32 %v1215, 4294901760
    %1612 = vmatpush1.msra.mxu0 %v1611
    %1613 = vmatprep.subr.mxu0 0.0
    %v1614 = vand.u32 %v1214, 4294901760
    %1615 = vmatpush1.msra.mxu0 %v1614
    %1616 = vmatprep.subr.mxu0 0.0
    %v1617 = vand.u32 %v1213, 4294901760
    %1618 = vmatpush1.msra.mxu0 %v1617
    %1619 = vmatprep.subr.mxu0 0.0
    %v1620 = vand.u32 %v1212, 4294901760
    %1621 = vmatpush1.msra.mxu0 %v1620
    %1622 = vmatprep.subr.mxu0 0.0
    %v1623 = vand.u32 %v1211, 4294901760
    %1624 = vmatpush1.msra.mxu0 %v1623
    %1625 = vmatprep.subr.mxu0 0.0
    %v1626 = vand.u32 %v1210, 4294901760
    %1627 = vmatpush1.msra.mxu0 %v1626
    %1628 = vmatprep.subr.mxu0 0.0
    %1629 = vmatpush2.msra.mxu0 0.0
    %1630 = vmatprep.subr.mxu0 0.0
    %1631 = vmatpush2.msra.mxu0 0.0
    %1632 = vmatprep.subr.mxu0 0.0
    %1633 = vmatpush2.msra.mxu0 0.0
    %1634 = vmatprep.subr.mxu0 0.0
    %1635 = vmatpush2.msra.mxu0 0.0
    %1636 = vmatprep.subr.mxu0 0.0
    %1637 = vmatpush2.msra.mxu0 0.0
    %1638 = vmatprep.subr.mxu0 0.0
    %1639 = vmatpush2.msra.mxu0 0.0
    %1640 = vmatprep.subr.mxu0 0.0
    %1641 = vmatpush2.msra.mxu0 0.0
    %1642 = vmatprep.subr.mxu0 0.0
    %1643 = vmatpush2.msra.mxu0 0.0
    %1644 = vmatprep.subr.mxu0 0.0
    %1645 = vmatpush2.msra.mxu0 0.0
    %1646 = vmatprep.subr.mxu0 0.0
    %1647 = vmatpush2.msra.mxu0 0.0
    %1648 = vmatprep.subr.mxu0 0.0
    %1649 = vmatpush2.msra.mxu0 0.0
    %1650 = vmatprep.subr.mxu0 0.0
    %1651 = vmatpush2.msra.mxu0 0.0
    %1652 = vmatprep.subr.mxu0 0.0
    %1653 = vmatpush2.msra.mxu0 0.0
    %1654 = vmatprep.subr.mxu0 0.0
    %1655 = vmatpush2.msra.mxu0 0.0
    %1656 = vmatprep.subr.mxu0 0.0
    %1657 = vmatpush2.msra.mxu0 0.0
    %1658 = vmatprep.subr.mxu0 0.0
    %1659 = vmatpush2.msra.mxu0 0.0
    %1660 = vmatprep.mubr.f32.mxu0 0.0
    %v1661 = vand.u32 %v1208, 4294901760
    %v1662 = vsub.f32 %v1208, %v1661
    %v1663 = vand.u32 %v1662, 4294901760
    %1664 = vmatmul.mubr.f32.gmra.mxu0 %v1663
    %v1665 = vpop.f32.mrf.mxu0
    %v1666 = vadd.f32 %v1577, %v1665
    %v1667 = vpop.f32.mrf.mxu0
    %1668 = vdwg.mxu0
    %1669 = vmatprep.subr.mxu0 0.0
    %v1670 = vand.u32 %v1225, 4294901760
    %v1671 = vsub.f32 %v1225, %v1670
    %v1672 = vand.u32 %v1671, 4294901760
    %1673 = vmatpush1.msra.mxu0 %v1672
    %1674 = vmatprep.subr.mxu0 0.0
    %v1675 = vand.u32 %v1224, 4294901760
    %v1676 = vsub.f32 %v1224, %v1675
    %v1677 = vand.u32 %v1676, 4294901760
    %1678 = vmatpush1.msra.mxu0 %v1677
    %1679 = vmatprep.subr.mxu0 0.0
    %v1680 = vand.u32 %v1223, 4294901760
    %v1681 = vsub.f32 %v1223, %v1680
    %v1682 = vand.u32 %v1681, 4294901760
    %1683 = vmatpush1.msra.mxu0 %v1682
    %1684 = vmatprep.subr.mxu0 0.0
    %v1685 = vand.u32 %v1222, 4294901760
    %v1686 = vsub.f32 %v1222, %v1685
    %v1687 = vand.u32 %v1686, 4294901760
    %1688 = vmatpush1.msra.mxu0 %v1687
    %1689 = vmatprep.subr.mxu0 0.0
    %v1690 = vand.u32 %v1221, 4294901760
    %v1691 = vsub.f32 %v1221, %v1690
    %v1692 = vand.u32 %v1691, 4294901760
    %1693 = vmatpush1.msra.mxu0 %v1692
    %1694 = vmatprep.subr.mxu0 0.0
    %v1695 = vand.u32 %v1220, 4294901760
    %v1696 = vsub.f32 %v1220, %v1695
    %v1697 = vand.u32 %v1696, 4294901760
    %1698 = vmatpush1.msra.mxu0 %v1697
    %1699 = vmatprep.subr.mxu0 0.0
    %v1700 = vand.u32 %v1219, 4294901760
    %v1701 = vsub.f32 %v1219, %v1700
    %v1702 = vand.u32 %v1701, 4294901760
    %1703 = vmatpush1.msra.mxu0 %v1702
    %1704 = vmatprep.subr.mxu0 0.0
    %v1705 = vand.u32 %v1218, 4294901760
    %v1706 = vsub.f32 %v1218, %v1705
    %v1707 = vand.u32 %v1706, 4294901760
    %1708 = vmatpush1.msra.mxu0 %v1707
    %1709 = vmatprep.subr.mxu0 0.0
    %v1710 = vand.u32 %v1217, 4294901760
    %v1711 = vsub.f32 %v1217, %v1710
    %v1712 = vand.u32 %v1711, 4294901760
    %1713 = vmatpush1.msra.mxu0 %v1712
    %1714 = vmatprep.subr.mxu0 0.0
    %v1715 = vand.u32 %v1216, 4294901760
    %v1716 = vsub.f32 %v1216, %v1715
    %v1717 = vand.u32 %v1716, 4294901760
    %1718 = vmatpush1.msra.mxu0 %v1717
    %1719 = vmatprep.subr.mxu0 0.0
    %v1720 = vand.u32 %v1215, 4294901760
    %v1721 = vsub.f32 %v1215, %v1720
    %v1722 = vand.u32 %v1721, 4294901760
    %1723 = vmatpush1.msra.mxu0 %v1722
    %1724 = vmatprep.subr.mxu0 0.0
    %v1725 = vand.u32 %v1214, 4294901760
    %v1726 = vsub.f32 %v1214, %v1725
    %v1727 = vand.u32 %v1726, 4294901760
    %1728 = vmatpush1.msra.mxu0 %v1727
    %1729 = vmatprep.subr.mxu0 0.0
    %v1730 = vand.u32 %v1213, 4294901760
    %v1731 = vsub.f32 %v1213, %v1730
    %v1732 = vand.u32 %v1731, 4294901760
    %1733 = vmatpush1.msra.mxu0 %v1732
    %1734 = vmatprep.subr.mxu0 0.0
    %v1735 = vand.u32 %v1212, 4294901760
    %v1736 = vsub.f32 %v1212, %v1735
    %v1737 = vand.u32 %v1736, 4294901760
    %1738 = vmatpush1.msra.mxu0 %v1737
    %1739 = vmatprep.subr.mxu0 0.0
    %v1740 = vand.u32 %v1211, 4294901760
    %v1741 = vsub.f32 %v1211, %v1740
    %v1742 = vand.u32 %v1741, 4294901760
    %1743 = vmatpush1.msra.mxu0 %v1742
    %1744 = vmatprep.subr.mxu0 0.0
    %v1745 = vand.u32 %v1210, 4294901760
    %v1746 = vsub.f32 %v1210, %v1745
    %v1747 = vand.u32 %v1746, 4294901760
    %1748 = vmatpush1.msra.mxu0 %v1747
    %1749 = vmatprep.subr.mxu0 0.0
    %1750 = vmatpush2.msra.mxu0 0.0
    %1751 = vmatprep.subr.mxu0 0.0
    %1752 = vmatpush2.msra.mxu0 0.0
    %1753 = vmatprep.subr.mxu0 0.0
    %1754 = vmatpush2.msra.mxu0 0.0
    %1755 = vmatprep.subr.mxu0 0.0
    %1756 = vmatpush2.msra.mxu0 0.0
    %1757 = vmatprep.subr.mxu0 0.0
    %1758 = vmatpush2.msra.mxu0 0.0
    %1759 = vmatprep.subr.mxu0 0.0
    %1760 = vmatpush2.msra.mxu0 0.0
    %1761 = vmatprep.subr.mxu0 0.0
    %1762 = vmatpush2.msra.mxu0 0.0
    %1763 = vmatprep.subr.mxu0 0.0
    %1764 = vmatpush2.msra.mxu0 0.0
    %1765 = vmatprep.subr.mxu0 0.0
    %1766 = vmatpush2.msra.mxu0 0.0
    %1767 = vmatprep.subr.mxu0 0.0
    %1768 = vmatpush2.msra.mxu0 0.0
    %1769 = vmatprep.subr.mxu0 0.0
    %1770 = vmatpush2.msra.mxu0 0.0
    %1771 = vmatprep.subr.mxu0 0.0
    %1772 = vmatpush2.msra.mxu0 0.0
    %1773 = vmatprep.subr.mxu0 0.0
    %1774 = vmatpush2.msra.mxu0 0.0
    %1775 = vmatprep.subr.mxu0 0.0
    %1776 = vmatpush2.msra.mxu0 0.0
    %1777 = vmatprep.subr.mxu0 0.0
    %1778 = vmatpush2.msra.mxu0 0.0
    %1779 = vmatprep.subr.mxu0 0.0
    %1780 = vmatpush2.msra.mxu0 0.0
    %1781 = vmatprep.mubr.f32.mxu0 0.0
    %v1782 = vand.u32 %v1208, 4294901760
    %1783 = vmatmul.mubr.f32.gmra.mxu0 %v1782
    %v1784 = vpop.f32.mrf.mxu0
    %v1785 = vadd.f32 %v1666, %v1784
    %v1786 = vpop.f32.mrf.mxu0
    %1787 = vdwg.mxu0
    %1788 = vmatprep.subr.mxu0 0.0
    %v1789 = vand.u32 %v1225, 4294901760
    %1790 = vmatpush1.msra.mxu0 %v1789
    %1791 = vmatprep.subr.mxu0 0.0
    %v1792 = vand.u32 %v1224, 4294901760
    %1793 = vmatpush1.msra.mxu0 %v1792
    %1794 = vmatprep.subr.mxu0 0.0
    %v1795 = vand.u32 %v1223, 4294901760
    %1796 = vmatpush1.msra.mxu0 %v1795
    %1797 = vmatprep.subr.mxu0 0.0
    %v1798 = vand.u32 %v1222, 4294901760
    %1799 = vmatpush1.msra.mxu0 %v1798
    %1800 = vmatprep.subr.mxu0 0.0
    %v1801 = vand.u32 %v1221, 4294901760
    %1802 = vmatpush1.msra.mxu0 %v1801
    %1803 = vmatprep.subr.mxu0 0.0
    %v1804 = vand.u32 %v1220, 4294901760
    %1805 = vmatpush1.msra.mxu0 %v1804
    %1806 = vmatprep.subr.mxu0 0.0
    %v1807 = vand.u32 %v1219, 4294901760
    %1808 = vmatpush1.msra.mxu0 %v1807
    %1809 = vmatprep.subr.mxu0 0.0
    %v1810 = vand.u32 %v1218, 4294901760
    %1811 = vmatpush1.msra.mxu0 %v1810
    %1812 = vmatprep.subr.mxu0 0.0
    %v1813 = vand.u32 %v1217, 4294901760
    %1814 = vmatpush1.msra.mxu0 %v1813
    %1815 = vmatprep.subr.mxu0 0.0
    %v1816 = vand.u32 %v1216, 4294901760
    %1817 = vmatpush1.msra.mxu0 %v1816
    %1818 = vmatprep.subr.mxu0 0.0
    %v1819 = vand.u32 %v1215, 4294901760
    %1820 = vmatpush1.msra.mxu0 %v1819
    %1821 = vmatprep.subr.mxu0 0.0
    %v1822 = vand.u32 %v1214, 4294901760
    %1823 = vmatpush1.msra.mxu0 %v1822
    %1824 = vmatprep.subr.mxu0 0.0
    %v1825 = vand.u32 %v1213, 4294901760
    %1826 = vmatpush1.msra.mxu0 %v1825
    %1827 = vmatprep.subr.mxu0 0.0
    %v1828 = vand.u32 %v1212, 4294901760
    %1829 = vmatpush1.msra.mxu0 %v1828
    %1830 = vmatprep.subr.mxu0 0.0
    %v1831 = vand.u32 %v1211, 4294901760
    %1832 = vmatpush1.msra.mxu0 %v1831
    %1833 = vmatprep.subr.mxu0 0.0
    %v1834 = vand.u32 %v1210, 4294901760
    %1835 = vmatpush1.msra.mxu0 %v1834
    %1836 = vmatprep.subr.mxu0 0.0
    %1837 = vmatpush2.msra.mxu0 0.0
    %1838 = vmatprep.subr.mxu0 0.0
    %1839 = vmatpush2.msra.mxu0 0.0
    %1840 = vmatprep.subr.mxu0 0.0
    %1841 = vmatpush2.msra.mxu0 0.0
    %1842 = vmatprep.subr.mxu0 0.0
    %1843 = vmatpush2.msra.mxu0 0.0
    %1844 = vmatprep.subr.mxu0 0.0
    %1845 = vmatpush2.msra.mxu0 0.0
    %1846 = vmatprep.subr.mxu0 0.0
    %1847 = vmatpush2.msra.mxu0 0.0
    %1848 = vmatprep.subr.mxu0 0.0
    %1849 = vmatpush2.msra.mxu0 0.0
    %1850 = vmatprep.subr.mxu0 0.0
    %1851 = vmatpush2.msra.mxu0 0.0
    %1852 = vmatprep.subr.mxu0 0.0
    %1853 = vmatpush2.msra.mxu0 0.0
    %1854 = vmatprep.subr.mxu0 0.0
    %1855 = vmatpush2.msra.mxu0 0.0
    %1856 = vmatprep.subr.mxu0 0.0
    %1857 = vmatpush2.msra.mxu0 0.0
    %1858 = vmatprep.subr.mxu0 0.0
    %1859 = vmatpush2.msra.mxu0 0.0
    %1860 = vmatprep.subr.mxu0 0.0
    %1861 = vmatpush2.msra.mxu0 0.0
    %1862 = vmatprep.subr.mxu0 0.0
    %1863 = vmatpush2.msra.mxu0 0.0
    %1864 = vmatprep.subr.mxu0 0.0
    %1865 = vmatpush2.msra.mxu0 0.0
    %1866 = vmatprep.subr.mxu0 0.0
    %1867 = vmatpush2.msra.mxu0 0.0
    %1868 = vmatprep.mubr.f32.mxu0 0.0
    %v1869 = vand.u32 %v1208, 4294901760
    %1870 = vmatmul.mubr.f32.gmra.mxu0 %v1869
    %v1871 = vpop.f32.mrf.mxu0
    %v1872 = vadd.f32 %v1785, %v1871
    %v1873 = vpop.f32.mrf.mxu0
    %1874 = vdwg.mxu0
    %vm1875 = vcmask 31744
    %1876 = vst.msk [vmem:[%s3] sm:$0xff] %vm1875, %v1872
    // Predicated region
    $region22: #{duelnet_forward.1} parent=1 // pred_check
      _
    $region23: #{duelnet_forward.1} parent=1 // pred_check_branch
      %1878 = sbr.rel (0) target = $region25
    $region24: #{duelnet_forward.1} parent=1 // pred_region
      _
    $region25: #{duelnet_forward.1} parent=1 // pred_fallthru
      _
    // Predicated region
    $region26: #{duelnet_forward.1} parent=1 // pred_check
      _
    $region27: #{duelnet_forward.1} parent=1 // pred_check_branch
      %1880 = sbr.rel (0) target = $region29
    $region28: #{duelnet_forward.1} parent=1 // pred_region
      _
    $region29: #{duelnet_forward.1} parent=1 // pred_fallthru
      _
    %1881 = vsyncpa [#allocation3], 1
    %1882 = vsyncpa [#allocation5], 1

</llo_original>
